<compile_context>
chip_gen: v7x
topology: tpu7x:2x2x1
jax: 0.10.0
libtpu: 0.0.40
codegen_flags: <defaults>
</compile_context>

<pallas_src>
import jax
import jax.numpy as jnp
from jax.experimental import pallas as pl
from jax.experimental.pallas import tpu as pltpu


# ----------------------------- Pallas kernel ------------------------------- #

def _mlp_kernel(x_ref,
                w1_ref, b1_ref, w2_ref, b2_ref, w3_ref, b3_ref,
                w4_ref, b4_ref, w5_ref, b5_ref,
                out_ref, feat_ref):
    """Fused 5-layer MLP on one (TM, 128) row tile.

    Weights are bf16 (lane-padded), biases f32; all matmuls accumulate in f32.
    """
    def dense(h_bf16, w_ref, b_ref):
        return jnp.dot(h_bf16, w_ref[...],
                       preferred_element_type=jnp.float32) + b_ref[...]

    h = dense(x_ref[...], w1_ref, b1_ref)          # fc1
    h = jnp.maximum(h, 0.0).astype(jnp.bfloat16)
    h = dense(h, w2_ref, b2_ref)                   # fc2
    h = jnp.maximum(h, 0.0).astype(jnp.bfloat16)
    h = dense(h, w3_ref, b3_ref)                   # fc3
    h = jnp.maximum(h, 0.0).astype(jnp.bfloat16)
    feat = dense(h, w4_ref, b4_ref)                # fc4 -> x_feat (pre-ReLU)
    feat_ref[...] = feat.astype(feat_ref.dtype)
    h = jnp.maximum(feat, 0.0).astype(jnp.bfloat16)
    out = dense(h, w5_ref, b5_ref)                 # fc5 -> logits
    out_ref[...] = out.astype(out_ref.dtype)


# ------------------------------ JAX wrapper -------------------------------- #

def _round_up(x, m):
    return ((x + m - 1) // m) * m


def pointnet_dis_forward(x, params, *, tm=256):
    """x: (M, num_points) f32 -> (logits (M, k), x_feat (M, fmap[3])), both f32."""
    M, num_points = x.shape
    dims = [num_points] + [params[f"w{i}"].shape[1] for i in range(1, 6)]
    pdims = [_round_up(d, 128) for d in dims]      # lane-dense padded widths

    TM = min(tm, _round_up(M, 8))                  # fixed tile; small-batch friendly
    Mp = _round_up(M, TM)                          # pad rows instead of TM=M fallback

    # Zero-pad input rows/features (zero padding is exact: padded weight rows are 0).
    xp = (jnp.zeros((Mp, pdims[0]), jnp.bfloat16)
          .at[:M, :dims[0]].set(x.astype(jnp.bfloat16)))

    operands = [xp]
    for li in range(1, 6):
        w = params[f"w{li}"]
        b = params[f"b{li}"]
        kin, kout = w.shape
        wp = (jnp.zeros((pdims[li - 1], pdims[li]), jnp.bfloat16)
              .at[:kin, :kout].set(w.astype(jnp.bfloat16)))
        bp = (jnp.zeros((1, pdims[li]), jnp.float32)
              .at[0, :kout].set(b.astype(jnp.float32)))
        operands += [wp, bp]

    grid = (Mp // TM,)

    def row_spec(width):
        return pl.BlockSpec((TM, width), lambda i: (i, 0))

    def const_spec(shape):
        return pl.BlockSpec(shape, lambda i: (0, 0))

    in_specs = [row_spec(pdims[0])]
    for li in range(1, 6):
        in_specs.append(const_spec((pdims[li - 1], pdims[li])))   # weight
        in_specs.append(const_spec((1, pdims[li])))               # bias

    out_specs = [row_spec(pdims[5]), row_spec(pdims[4])]
    out_shape = (jax.ShapeDtypeStruct((Mp, pdims[5]), jnp.float32),
                 jax.ShapeDtypeStruct((Mp, pdims[4]), jnp.float32))

    flops = 2 * Mp * sum(pdims[i] * pdims[i + 1] for i in range(5))
    bytes_accessed = (Mp * pdims[0] * 2
                      + sum(pdims[i] * pdims[i + 1] * 2 + pdims[i + 1] * 4
                            for i in range(5))
                      + Mp * (pdims[4] + pdims[5]) * 4)

    out_pad, feat_pad = pl.pallas_call(
        _mlp_kernel,
        out_shape=out_shape,
        grid_spec=pltpu.PrefetchScalarGridSpec(
            num_scalar_prefetch=0,
            grid=grid,
            in_specs=in_specs,
            out_specs=out_specs,
        ),
        compiler_params=pltpu.CompilerParams(
            dimension_semantics=("parallel",)),
        cost_estimate=pl.CostEstimate(
            flops=flops, transcendentals=0, bytes_accessed=bytes_accessed),
    )(*operands)

    # Slice padded lanes / rows outside the kernel (keeps kernel stores lane-dense).
    return out_pad[:M, :dims[5]], feat_pad[:M, :dims[4]]


# --------------------------- params & reference ----------------------------- #

def init_params(key, num_points=60, k=2, fmap=(32, 64, 256, 32)):
    """Deterministic test parameters, stored as (fan_in, fan_out) matrices.

    The module's init_weights(init_type='normal') is host-side parameter init
    (not part of forward); here weights are scaled 1/sqrt(fan_in) so activations
    stay O(1) and the numerical check is meaningful.
    """
    dims = [num_points, *fmap, k]
    params = {}
    for li in range(5):
        key, kw, kb = jax.random.split(key, 3)
        fan_in, fan_out = dims[li], dims[li + 1]
        params[f"w{li + 1}"] = (jax.random.normal(kw, (fan_in, fan_out), jnp.float32)
                                / jnp.sqrt(fan_in))
        params[f"b{li + 1}"] = 0.1 * jax.random.normal(kb, (fan_out,), jnp.float32)
    return params


def reference_forward(x, params):
    """Pure-JAX f32 reference of PointNetDis.forward."""
    h = x.astype(jnp.float32)
    h = jax.nn.relu(h @ params["w1"] + params["b1"])
    h = jax.nn.relu(h @ params["w2"] + params["b2"])
    h = jax.nn.relu(h @ params["w3"] + params["b3"])
    feat = h @ params["w4"] + params["b4"]
    out = jax.nn.relu(feat) @ params["w5"] + params["b5"]
    return out, feat


# TODO(synk): calc_dis_loss / calc_gen_loss (LSGAN training losses) are not part of
# the forward pass and are not reproduced here.

if __name__ == "__main__":
    key = jax.random.PRNGKey(0)
    k_params, k_x = jax.random.split(key)

    num_points, k, fmap = 60, 2, (32, 64, 256, 32)   # module defaults
    B = 512                                          # exercises a 2-step "parallel" grid (TM=256)

    params = init_params(k_params, num_points=num_points, k=k, fmap=fmap)
    x = jax.random.normal(k_x, (B, num_points), jnp.float32)

    out, feat = pointnet_dis_forward(x, params)
    out, feat = jax.block_until_ready((out, feat))

    ref_out, ref_feat = reference_forward(x, params)
    assert out.shape == (B, k), out.shape
    assert feat.shape == (B, fmap[3]), feat.shape
    # bf16 MXU operands -> relaxed tolerance vs the f32 reference.
    assert jnp.allclose(out, ref_out, atol=3e-2, rtol=3e-2), \
        float(jnp.max(jnp.abs(out - ref_out)))
    assert jnp.allclose(feat, ref_feat, atol=3e-2, rtol=3e-2), \
        float(jnp.max(jnp.abs(feat - ref_feat)))

    print("KERNEL_OK")
</pallas_src>

<mosaic_0001>
module attributes {stable_mosaic.version = 11 : i64} {
  func.func @_mlp_kernel(%arg0: i32, %arg1: memref<256x128xbf16, #tpu.memory_space<vmem>>, %arg2: memref<128x128xbf16, #tpu.memory_space<vmem>>, %arg3: memref<1x128xf32, #tpu.memory_space<vmem>>, %arg4: memref<128x128xbf16, #tpu.memory_space<vmem>>, %arg5: memref<1x128xf32, #tpu.memory_space<vmem>>, %arg6: memref<128x256xbf16, #tpu.memory_space<vmem>>, %arg7: memref<1x256xf32, #tpu.memory_space<vmem>>, %arg8: memref<256x128xbf16, #tpu.memory_space<vmem>>, %arg9: memref<1x128xf32, #tpu.memory_space<vmem>>, %arg10: memref<128x128xbf16, #tpu.memory_space<vmem>>, %arg11: memref<1x128xf32, #tpu.memory_space<vmem>>, %arg12: memref<256x128xf32, #tpu.memory_space<vmem>>, %arg13: memref<256x128xf32, #tpu.memory_space<vmem>>) attributes {dimension_semantics = [#tpu.dimension_semantics<parallel>], iteration_bounds = array<i64: 2>, scalar_prefetch = 0 : i64, scratch_operands = 0 : i64, tpu.core_type = #tpu.core_type<tc>, window_params = [{transform_indices = @transform_0, window_bounds = array<i64: 256, 128>}, {pipeline_mode = #tpu.pipeline_mode<synchronous>, transform_indices = @transform_1, window_bounds = array<i64: 128, 128>}, {pipeline_mode = #tpu.pipeline_mode<synchronous>, transform_indices = @transform_2, window_bounds = array<i64: 1, 128>}, {pipeline_mode = #tpu.pipeline_mode<synchronous>, transform_indices = @transform_3, window_bounds = array<i64: 128, 128>}, {pipeline_mode = #tpu.pipeline_mode<synchronous>, transform_indices = @transform_4, window_bounds = array<i64: 1, 128>}, {pipeline_mode = #tpu.pipeline_mode<synchronous>, transform_indices = @transform_5, window_bounds = array<i64: 128, 256>}, {pipeline_mode = #tpu.pipeline_mode<synchronous>, transform_indices = @transform_6, window_bounds = array<i64: 1, 256>}, {pipeline_mode = #tpu.pipeline_mode<synchronous>, transform_indices = @transform_7, window_bounds = array<i64: 256, 128>}, {pipeline_mode = #tpu.pipeline_mode<synchronous>, transform_indices = @transform_8, window_bounds = array<i64: 1, 128>}, {pipeline_mode = #tpu.pipeline_mode<synchronous>, transform_indices = @transform_9, window_bounds = array<i64: 128, 128>}, {pipeline_mode = #tpu.pipeline_mode<synchronous>, transform_indices = @transform_10, window_bounds = array<i64: 1, 128>}, {transform_indices = @transform_11, window_bounds = array<i64: 256, 128>}, {transform_indices = @transform_12, window_bounds = array<i64: 256, 128>}]} {
    %c0 = arith.constant 0 : index
    %c0_0 = arith.constant 0 : index
    %0 = vector.load %arg1[%c0, %c0_0] : memref<256x128xbf16, #tpu.memory_space<vmem>>, vector<256x128xbf16>
    %c0_1 = arith.constant 0 : index
    %c0_2 = arith.constant 0 : index
    %1 = vector.load %arg2[%c0_1, %c0_2] : memref<128x128xbf16, #tpu.memory_space<vmem>>, vector<128x128xbf16>
    %cst = arith.constant dense<0.000000e+00> : vector<256x128xf32>
    %2 = tpu.matmul %0, %1, %cst {dimension_numbers = #tpu.dot_dimension_numbers<[1], [0], [0], [1], [0, 0, 1, 1], [], []>} : vector<256x128xbf16>, vector<128x128xbf16>, vector<256x128xf32> -> vector<256x128xf32>
    %c0_3 = arith.constant 0 : index
    %c0_4 = arith.constant 0 : index
    %3 = vector.load %arg3[%c0_3, %c0_4] : memref<1x128xf32, #tpu.memory_space<vmem>>, vector<1x128xf32>
    %4 = vector.broadcast %3 : vector<1x128xf32> to vector<256x128xf32>
    %5 = arith.addf %2, %4 : vector<256x128xf32>
    %cst_5 = arith.constant 0.000000e+00 : f32
    %6 = vector.broadcast %cst_5 : f32 to vector<256x128xf32>
    %7 = arith.maximumf %5, %6 : vector<256x128xf32>
    %8 = arith.truncf %7 : vector<256x128xf32> to vector<256x128xbf16>
    %c0_6 = arith.constant 0 : index
    %c0_7 = arith.constant 0 : index
    %9 = vector.load %arg4[%c0_6, %c0_7] : memref<128x128xbf16, #tpu.memory_space<vmem>>, vector<128x128xbf16>
    %cst_8 = arith.constant dense<0.000000e+00> : vector<256x128xf32>
    %10 = tpu.matmul %8, %9, %cst_8 {dimension_numbers = #tpu.dot_dimension_numbers<[1], [0], [0], [1], [0, 0, 1, 1], [], []>} : vector<256x128xbf16>, vector<128x128xbf16>, vector<256x128xf32> -> vector<256x128xf32>
    %c0_9 = arith.constant 0 : index
    %c0_10 = arith.constant 0 : index
    %11 = vector.load %arg5[%c0_9, %c0_10] : memref<1x128xf32, #tpu.memory_space<vmem>>, vector<1x128xf32>
    %12 = vector.broadcast %11 : vector<1x128xf32> to vector<256x128xf32>
    %13 = arith.addf %10, %12 : vector<256x128xf32>
    %cst_11 = arith.constant 0.000000e+00 : f32
    %14 = vector.broadcast %cst_11 : f32 to vector<256x128xf32>
    %15 = arith.maximumf %13, %14 : vector<256x128xf32>
    %16 = arith.truncf %15 : vector<256x128xf32> to vector<256x128xbf16>
    %c0_12 = arith.constant 0 : index
    %c0_13 = arith.constant 0 : index
    %17 = vector.load %arg6[%c0_12, %c0_13] : memref<128x256xbf16, #tpu.memory_space<vmem>>, vector<128x256xbf16>
    %cst_14 = arith.constant dense<0.000000e+00> : vector<256x256xf32>
    %18 = tpu.matmul %16, %17, %cst_14 {dimension_numbers = #tpu.dot_dimension_numbers<[1], [0], [0], [1], [0, 0, 1, 1], [], []>} : vector<256x128xbf16>, vector<128x256xbf16>, vector<256x256xf32> -> vector<256x256xf32>
    %c0_15 = arith.constant 0 : index
    %c0_16 = arith.constant 0 : index
    %19 = vector.load %arg7[%c0_15, %c0_16] : memref<1x256xf32, #tpu.memory_space<vmem>>, vector<1x256xf32>
    %20 = vector.broadcast %19 : vector<1x256xf32> to vector<256x256xf32>
    %21 = arith.addf %18, %20 : vector<256x256xf32>
    %cst_17 = arith.constant 0.000000e+00 : f32
    %22 = vector.broadcast %cst_17 : f32 to vector<256x256xf32>
    %23 = arith.maximumf %21, %22 : vector<256x256xf32>
    %24 = arith.truncf %23 : vector<256x256xf32> to vector<256x256xbf16>
    %c0_18 = arith.constant 0 : index
    %c0_19 = arith.constant 0 : index
    %25 = vector.load %arg8[%c0_18, %c0_19] : memref<256x128xbf16, #tpu.memory_space<vmem>>, vector<256x128xbf16>
    %cst_20 = arith.constant dense<0.000000e+00> : vector<256x128xf32>
    %26 = tpu.matmul %24, %25, %cst_20 {dimension_numbers = #tpu.dot_dimension_numbers<[1], [0], [0], [1], [0, 0, 1, 1], [], []>} : vector<256x256xbf16>, vector<256x128xbf16>, vector<256x128xf32> -> vector<256x128xf32>
    %c0_21 = arith.constant 0 : index
    %c0_22 = arith.constant 0 : index
    %27 = vector.load %arg9[%c0_21, %c0_22] : memref<1x128xf32, #tpu.memory_space<vmem>>, vector<1x128xf32>
    %28 = vector.broadcast %27 : vector<1x128xf32> to vector<256x128xf32>
    %29 = arith.addf %26, %28 : vector<256x128xf32>
    %c0_23 = arith.constant 0 : index
    %c0_24 = arith.constant 0 : index
    %30 = vector.load %arg13[%c0_23, %c0_24] : memref<256x128xf32, #tpu.memory_space<vmem>>, vector<256x128xf32>
    tpu.vector_store %arg13[%c0_23, %c0_24], %29 {strides = array<i32>} : memref<256x128xf32, #tpu.memory_space<vmem>>, vector<256x128xf32>,
    %cst_25 = arith.constant 0.000000e+00 : f32
    %31 = vector.broadcast %cst_25 : f32 to vector<256x128xf32>
    %32 = arith.maximumf %29, %31 : vector<256x128xf32>
    %33 = arith.truncf %32 : vector<256x128xf32> to vector<256x128xbf16>
    %c0_26 = arith.constant 0 : index
    %c0_27 = arith.constant 0 : index
    %34 = vector.load %arg10[%c0_26, %c0_27] : memref<128x128xbf16, #tpu.memory_space<vmem>>, vector<128x128xbf16>
    %cst_28 = arith.constant dense<0.000000e+00> : vector<256x128xf32>
    %35 = tpu.matmul %33, %34, %cst_28 {dimension_numbers = #tpu.dot_dimension_numbers<[1], [0], [0], [1], [0, 0, 1, 1], [], []>} : vector<256x128xbf16>, vector<128x128xbf16>, vector<256x128xf32> -> vector<256x128xf32>
    %c0_29 = arith.constant 0 : index
    %c0_30 = arith.constant 0 : index
    %36 = vector.load %arg11[%c0_29, %c0_30] : memref<1x128xf32, #tpu.memory_space<vmem>>, vector<1x128xf32>
    %37 = vector.broadcast %36 : vector<1x128xf32> to vector<256x128xf32>
    %38 = arith.addf %35, %37 : vector<256x128xf32>
    %c0_31 = arith.constant 0 : index
    %c0_32 = arith.constant 0 : index
    %39 = vector.load %arg12[%c0_31, %c0_32] : memref<256x128xf32, #tpu.memory_space<vmem>>, vector<256x128xf32>
    tpu.vector_store %arg12[%c0_31, %c0_32], %38 {strides = array<i32>} : memref<256x128xf32, #tpu.memory_space<vmem>>, vector<256x128xf32>,
    return
  }
  func.func @transform_0(%arg0: i32) -> (i32, i32) {
    %c0_i32 = arith.constant 0 : i32
    %c0_i32_0 = arith.constant 0 : i32
    return %arg0, %c0_i32 : i32, i32
  }
  func.func @transform_1(%arg0: i32) -> (i32, i32) {
    %c0_i32 = arith.constant 0 : i32
    %c0_i32_0 = arith.constant 0 : i32
    %c0_i32_1 = arith.constant 0 : i32
    return %c0_i32, %c0_i32_0 : i32, i32
  }
  func.func @transform_2(%arg0: i32) -> (i32, i32) {
    %c0_i32 = arith.constant 0 : i32
    %c0_i32_0 = arith.constant 0 : i32
    %c0_i32_1 = arith.constant 0 : i32
    return %c0_i32, %c0_i32_0 : i32, i32
  }
  func.func @transform_3(%arg0: i32) -> (i32, i32) {
    %c0_i32 = arith.constant 0 : i32
    %c0_i32_0 = arith.constant 0 : i32
    %c0_i32_1 = arith.constant 0 : i32
    return %c0_i32, %c0_i32_0 : i32, i32
  }
  func.func @transform_4(%arg0: i32) -> (i32, i32) {
    %c0_i32 = arith.constant 0 : i32
    %c0_i32_0 = arith.constant 0 : i32
    %c0_i32_1 = arith.constant 0 : i32
    return %c0_i32, %c0_i32_0 : i32, i32
  }
  func.func @transform_5(%arg0: i32) -> (i32, i32) {
    %c0_i32 = arith.constant 0 : i32
    %c0_i32_0 = arith.constant 0 : i32
    %c0_i32_1 = arith.constant 0 : i32
    return %c0_i32, %c0_i32_0 : i32, i32
  }
  func.func @transform_6(%arg0: i32) -> (i32, i32) {
    %c0_i32 = arith.constant 0 : i32
    %c0_i32_0 = arith.constant 0 : i32
    %c0_i32_1 = arith.constant 0 : i32
    return %c0_i32, %c0_i32_0 : i32, i32
  }
  func.func @transform_7(%arg0: i32) -> (i32, i32) {
    %c0_i32 = arith.constant 0 : i32
    %c0_i32_0 = arith.constant 0 : i32
    %c0_i32_1 = arith.constant 0 : i32
    return %c0_i32, %c0_i32_0 : i32, i32
  }
  func.func @transform_8(%arg0: i32) -> (i32, i32) {
    %c0_i32 = arith.constant 0 : i32
    %c0_i32_0 = arith.constant 0 : i32
    %c0_i32_1 = arith.constant 0 : i32
    return %c0_i32, %c0_i32_0 : i32, i32
  }
  func.func @transform_9(%arg0: i32) -> (i32, i32) {
    %c0_i32 = arith.constant 0 : i32
    %c0_i32_0 = arith.constant 0 : i32
    %c0_i32_1 = arith.constant 0 : i32
    return %c0_i32, %c0_i32_0 : i32, i32
  }
  func.func @transform_10(%arg0: i32) -> (i32, i32) {
    %c0_i32 = arith.constant 0 : i32
    %c0_i32_0 = arith.constant 0 : i32
    %c0_i32_1 = arith.constant 0 : i32
    return %c0_i32, %c0_i32_0 : i32, i32
  }
  func.func @transform_11(%arg0: i32) -> (i32, i32) {
    %c0_i32 = arith.constant 0 : i32
    %c0_i32_0 = arith.constant 0 : i32
    return %arg0, %c0_i32 : i32, i32
  }
  func.func @transform_12(%arg0: i32) -> (i32, i32) {
    %c0_i32 = arith.constant 0 : i32
    %c0_i32_0 = arith.constant 0 : i32
    return %arg0, %c0_i32 : i32, i32
  }
}

</mosaic_0001>

<llo_original>
// kernel: tpu_custom_call.1
$region0: #{tpu_custom_call.1}
  #allocation0 [shape = 'u32[]', space=smem, size = 0x4, offset = 0x4, fixed_abs, tag = 'smem constant byte address 0x4 - core index']
  #allocation1 [shape = 'u32[144,128]{1,0:T(1,128)}', space=vmem, size = 0x12000, scoped, tag = 'internal scratch']
  %s0 = inlined_call_operand.hbm [shape: bf16[512,128], index: 0, kind: input, shape index: {}]
  %s1 = inlined_call_operand.hbm [shape: bf16[128,128], index: 1, kind: input, shape index: {}]
  %s2 = inlined_call_operand.vmem [shape: f32[1,128], index: 2, kind: input, shape index: {}]
  %s3 = inlined_call_operand.hbm [shape: bf16[128,128], index: 3, kind: input, shape index: {}]
  %s4 = inlined_call_operand.vmem [shape: f32[1,128], index: 4, kind: input, shape index: {}]
  %s5 = inlined_call_operand.hbm [shape: bf16[128,256], index: 5, kind: input, shape index: {}]
  %s6 = inlined_call_operand.vmem [shape: f32[1,256], index: 6, kind: input, shape index: {}]
  %s7 = inlined_call_operand.hbm [shape: bf16[256,128], index: 7, kind: input, shape index: {}]
  %s8 = inlined_call_operand.vmem [shape: f32[1,128], index: 8, kind: input, shape index: {}]
  %s9 = inlined_call_operand.hbm [shape: bf16[128,128], index: 9, kind: input, shape index: {}]
  %s10 = inlined_call_operand.vmem [shape: f32[1,128], index: 10, kind: input, shape index: {}]
  %s11 = inlined_call_operand.hbm [shape: f32[512,128], index: 11, kind: output, shape index: {0}]
  %s12 = inlined_call_operand.hbm [shape: f32[512,128], index: 12, kind: output, shape index: {1}]
  %13 = xla_tuple %s11, %s12
  %s14 = sld [smem:[#allocation0]]
  $region109: #{tpu_custom_call.1} parent=0
    _
  %s16 = ssub.s32 1, %s14
  %s17 = scalar_select 0, %s16, %s14
  $region1: #{tpu_custom_call.1} parent=0
    #allocation2 [shape = 'u8[131072]{0}', space=vmem, size = 0x20000, scoped, tag = 'input window, operand 0']
    #allocation3 [shape = 's32[2]{0}', space=sflag, size = 0x8, scoped, tag = 'scoped memory for tpu_custom_call.1']
    #allocation4 [shape = 's32[2]{0}', space=sflag, size = 0x8, scoped, tag = 'scoped memory for tpu_custom_call.1']
    #allocation5 [shape = 'u8[32768]{0}', space=vmem, size = 0x8000, scoped, tag = 'input window, operand 1, single buffered']
    #allocation6 [shape = 's32[1]{0}', space=sflag, size = 0x4, scoped, tag = 'scoped memory for tpu_custom_call.1']
    #allocation7 [shape = 'u8[32768]{0}', space=vmem, size = 0x8000, scoped, tag = 'input window, operand 3, single buffered']
    #allocation8 [shape = 'u8[65536]{0}', space=vmem, size = 0x10000, scoped, tag = 'input window, operand 5, single buffered']
    #allocation9 [shape = 's32[1]{0}', space=sflag, size = 0x4, scoped, tag = 'scoped memory for tpu_custom_call.1']
    #allocation10 [shape = 'u8[65536]{0}', space=vmem, size = 0x10000, scoped, tag = 'input window, operand 7, single buffered']
    #allocation11 [shape = 'u8[32768]{0}', space=vmem, size = 0x8000, scoped, tag = 'input window, operand 9, single buffered']
    #allocation12 [shape = 's32[1]{0}', space=sflag, size = 0x4, scoped, tag = 'scoped memory for tpu_custom_call.1']
    #allocation13 [shape = 'u8[262144]{0}', space=vmem, size = 0x40000, scoped, tag = 'output window, operand 0']
    #allocation14 [shape = 'u8[262144]{0}', space=vmem, size = 0x40000, scoped, tag = 'output window, operand 1']
    #allocation15 [shape = 's32[2]{0}', space=sflag, size = 0x8, scoped, tag = 'scoped memory for tpu_custom_call.1']
    %18 = vsyncpa [#allocation3], 0
    %s19 = scalar_lea.sflag [#allocation3], 1
    %20 = vsyncpa %s19, 0
    %21 = vsyncpa [#allocation6], 0
    %22 = vsyncpa [#allocation9], 0
    %23 = vsyncpa [#allocation12], 0
    %24 = vsyncpa [#allocation4], 0
    %s25 = scalar_lea.sflag [#allocation4], 1
    %26 = vsyncpa %s25, 0
    %27 = vsyncpa [#allocation15], 0
    %s28 = scalar_lea.sflag [#allocation15], 1
    %29 = vsyncpa %s28, 0
    loop: start=0, step=1, limit=4
    $region2: #{tpu_custom_call.1} parent=1 // loop_pre_header
      _
    $region3: #{tpu_custom_call.1} parent=1 // loop_header
      %s31 = sphi 0, %s35
      %p32 = scmp.ge.s32.totalorder %s31, 4
      %s41 = sphi 0, %s43
      %s44 = sphi 0, %s41
      %s45 = sphi 0, %s44
      %s61 = sphi 0, %s45
      %s65 = sphi 0, %s65
      %s67 = sphi 0, %s65
      %s68 = sphi 0, %s67
      %s82 = sphi 0, %s68
      %s86 = sphi 0, %s86
      %s88 = sphi 0, %s86
      %s89 = sphi 0, %s88
      %s103 = sphi 0, %s89
      %s107 = sphi 0, %s107
      %s109 = sphi 0, %s107
      %s110 = sphi 0, %s109
      %s124 = sphi 0, %s110
      %s128 = sphi 0, %s128
      %s130 = sphi 0, %s128
      %s131 = sphi 0, %s130
      %s145 = sphi 0, %s131
      %s149 = sphi 0, %s149
      %s151 = sphi 0, %s149
      %s152 = sphi 0, %s151
      %s166 = sphi 0, %s152
      %s170 = sphi 0, %s170
      %s172 = sphi 0, %s170
      %s173 = sphi 0, %s172
      %s187 = sphi 0, %s173
      %s191 = sphi 0, %s191
      %s193 = sphi 0, %s191
      %s194 = sphi 0, %s193
      %s208 = sphi 0, %s194
      %s212 = sphi 0, %s212
      %s214 = sphi 0, %s212
      %s215 = sphi 0, %s214
      %s229 = sphi 0, %s215
      %s233 = sphi 0, %s233
      %s235 = sphi 0, %s233
      %s236 = sphi 0, %s235
      %s250 = sphi 0, %s236
      %s254 = sphi 0, %s254
      %s256 = sphi 0, %s254
      %s257 = sphi 0, %s256
      %s271 = sphi 0, %s257
      %s277 = sphi 0, %s279
      %s280 = sphi 0, %s277
      %s281 = sphi 0, %s280
      %s297 = sphi 0, %s281
      %s303 = sphi 0, %s305
      %s306 = sphi 0, %s303
      %s307 = sphi 0, %s306
      %s323 = sphi 0, %s307
    $region4: #{tpu_custom_call.1} parent=1 // loop_header_branch
      %34 = sbr.rel (%p32) target = $region8
    $region5: #{tpu_custom_call.1} parent=1 // loop_body
      %s36 = ssub.s32 %s31, 1
      %s37 = ssub.s32 %s31, 2
      %s38 = sadd.s32 %s31, 1
      %s39 = ssub.s32 %s31, %s38
      %p40 = scmp.eq.s32.totalorder %s39, 0
      %s42 = sadd.s32 %s41, 1
      %s43 = scalar_select %p40, %s41, %s42
      %p46 = pneg %p40
      %p47 = scmp.eq.s32.totalorder %s31, 1
      %p48 = por %p46, %p47
      %p49 = scmp.ne.s32.totalorder %s41, %s44
      %p50 = scmp.eq.s32.totalorder %s31, 0
      %p51 = por %p49, %p50
      %p52 = scmp.ne.s32.totalorder %s41, %s44
      %p53 = scmp.eq.s32.totalorder %s36, 1
      %p54 = por %p52, %p53
      %p55 = scmp.ne.s32.totalorder %s44, %s45
      %p56 = scmp.eq.s32.totalorder %s36, 0
      %p57 = por %p55, %p56
      %p58 = scmp.ne.s32.totalorder %s44, %s45
      %p59 = scmp.eq.s32.totalorder %s37, 1
      %p60 = por %p58, %p59
      %p62 = scmp.ne.s32.totalorder %s45, %s61
      %p63 = scmp.eq.s32.totalorder %s37, 0
      %p64 = por %p62, %p63
      %s66 = sadd.s32 %s65, 1
      %p69 = scmp.eq.s32.totalorder %s31, 1
      %p70 = scmp.ne.s32.totalorder %s65, %s67
      %p71 = scmp.eq.s32.totalorder %s31, 0
      %p72 = por %p70, %p71
      %p73 = scmp.ne.s32.totalorder %s65, %s67
      %p74 = scmp.eq.s32.totalorder %s36, 1
      %p75 = por %p73, %p74
      %p76 = scmp.ne.s32.totalorder %s67, %s68
      %p77 = scmp.eq.s32.totalorder %s36, 0
      %p78 = por %p76, %p77
      %p79 = scmp.ne.s32.totalorder %s67, %s68
      %p80 = scmp.eq.s32.totalorder %s37, 1
      %p81 = por %p79, %p80
      %p83 = scmp.ne.s32.totalorder %s68, %s82
      %p84 = scmp.eq.s32.totalorder %s37, 0
      %p85 = por %p83, %p84
      %s87 = sadd.s32 %s86, 1
      %p90 = scmp.eq.s32.totalorder %s31, 1
      %p91 = scmp.ne.s32.totalorder %s86, %s88
      %p92 = scmp.eq.s32.totalorder %s31, 0
      %p93 = por %p91, %p92
      %p94 = scmp.ne.s32.totalorder %s86, %s88
      %p95 = scmp.eq.s32.totalorder %s36, 1
      %p96 = por %p94, %p95
      %p97 = scmp.ne.s32.totalorder %s88, %s89
      %p98 = scmp.eq.s32.totalorder %s36, 0
      %p99 = por %p97, %p98
      %p100 = scmp.ne.s32.totalorder %s88, %s89
      %p101 = scmp.eq.s32.totalorder %s37, 1
      %p102 = por %p100, %p101
      %p104 = scmp.ne.s32.totalorder %s89, %s103
      %p105 = scmp.eq.s32.totalorder %s37, 0
      %p106 = por %p104, %p105
      %s108 = sadd.s32 %s107, 1
      %p111 = scmp.eq.s32.totalorder %s31, 1
      %p112 = scmp.ne.s32.totalorder %s107, %s109
      %p113 = scmp.eq.s32.totalorder %s31, 0
      %p114 = por %p112, %p113
      %p115 = scmp.ne.s32.totalorder %s107, %s109
      %p116 = scmp.eq.s32.totalorder %s36, 1
      %p117 = por %p115, %p116
      %p118 = scmp.ne.s32.totalorder %s109, %s110
      %p119 = scmp.eq.s32.totalorder %s36, 0
      %p120 = por %p118, %p119
      %p121 = scmp.ne.s32.totalorder %s109, %s110
      %p122 = scmp.eq.s32.totalorder %s37, 1
      %p123 = por %p121, %p122
      %p125 = scmp.ne.s32.totalorder %s110, %s124
      %p126 = scmp.eq.s32.totalorder %s37, 0
      %p127 = por %p125, %p126
      %s129 = sadd.s32 %s128, 1
      %p132 = scmp.eq.s32.totalorder %s31, 1
      %p133 = scmp.ne.s32.totalorder %s128, %s130
      %p134 = scmp.eq.s32.totalorder %s31, 0
      %p135 = por %p133, %p134
      %p136 = scmp.ne.s32.totalorder %s128, %s130
      %p137 = scmp.eq.s32.totalorder %s36, 1
      %p138 = por %p136, %p137
      %p139 = scmp.ne.s32.totalorder %s130, %s131
      %p140 = scmp.eq.s32.totalorder %s36, 0
      %p141 = por %p139, %p140
      %p142 = scmp.ne.s32.totalorder %s130, %s131
      %p143 = scmp.eq.s32.totalorder %s37, 1
      %p144 = por %p142, %p143
      %p146 = scmp.ne.s32.totalorder %s131, %s145
      %p147 = scmp.eq.s32.totalorder %s37, 0
      %p148 = por %p146, %p147
      %s150 = sadd.s32 %s149, 1
      %p153 = scmp.eq.s32.totalorder %s31, 1
      %p154 = scmp.ne.s32.totalorder %s149, %s151
      %p155 = scmp.eq.s32.totalorder %s31, 0
      %p156 = por %p154, %p155
      %p157 = scmp.ne.s32.totalorder %s149, %s151
      %p158 = scmp.eq.s32.totalorder %s36, 1
      %p159 = por %p157, %p158
      %p160 = scmp.ne.s32.totalorder %s151, %s152
      %p161 = scmp.eq.s32.totalorder %s36, 0
      %p162 = por %p160, %p161
      %p163 = scmp.ne.s32.totalorder %s151, %s152
      %p164 = scmp.eq.s32.totalorder %s37, 1
      %p165 = por %p163, %p164
      %p167 = scmp.ne.s32.totalorder %s152, %s166
      %p168 = scmp.eq.s32.totalorder %s37, 0
      %p169 = por %p167, %p168
      %s171 = sadd.s32 %s170, 1
      %p174 = scmp.eq.s32.totalorder %s31, 1
      %p175 = scmp.ne.s32.totalorder %s170, %s172
      %p176 = scmp.eq.s32.totalorder %s31, 0
      %p177 = por %p175, %p176
      %p178 = scmp.ne.s32.totalorder %s170, %s172
      %p179 = scmp.eq.s32.totalorder %s36, 1
      %p180 = por %p178, %p179
      %p181 = scmp.ne.s32.totalorder %s172, %s173
      %p182 = scmp.eq.s32.totalorder %s36, 0
      %p183 = por %p181, %p182
      %p184 = scmp.ne.s32.totalorder %s172, %s173
      %p185 = scmp.eq.s32.totalorder %s37, 1
      %p186 = por %p184, %p185
      %p188 = scmp.ne.s32.totalorder %s173, %s187
      %p189 = scmp.eq.s32.totalorder %s37, 0
      %p190 = por %p188, %p189
      %s192 = sadd.s32 %s191, 1
      %p195 = scmp.eq.s32.totalorder %s31, 1
      %p196 = scmp.ne.s32.totalorder %s191, %s193
      %p197 = scmp.eq.s32.totalorder %s31, 0
      %p198 = por %p196, %p197
      %p199 = scmp.ne.s32.totalorder %s191, %s193
      %p200 = scmp.eq.s32.totalorder %s36, 1
      %p201 = por %p199, %p200
      %p202 = scmp.ne.s32.totalorder %s193, %s194
      %p203 = scmp.eq.s32.totalorder %s36, 0
      %p204 = por %p202, %p203
      %p205 = scmp.ne.s32.totalorder %s193, %s194
      %p206 = scmp.eq.s32.totalorder %s37, 1
      %p207 = por %p205, %p206
      %p209 = scmp.ne.s32.totalorder %s194, %s208
      %p210 = scmp.eq.s32.totalorder %s37, 0
      %p211 = por %p209, %p210
      %s213 = sadd.s32 %s212, 1
      %p216 = scmp.eq.s32.totalorder %s31, 1
      %p217 = scmp.ne.s32.totalorder %s212, %s214
      %p218 = scmp.eq.s32.totalorder %s31, 0
      %p219 = por %p217, %p218
      %p220 = scmp.ne.s32.totalorder %s212, %s214
      %p221 = scmp.eq.s32.totalorder %s36, 1
      %p222 = por %p220, %p221
      %p223 = scmp.ne.s32.totalorder %s214, %s215
      %p224 = scmp.eq.s32.totalorder %s36, 0
      %p225 = por %p223, %p224
      %p226 = scmp.ne.s32.totalorder %s214, %s215
      %p227 = scmp.eq.s32.totalorder %s37, 1
      %p228 = por %p226, %p227
      %p230 = scmp.ne.s32.totalorder %s215, %s229
      %p231 = scmp.eq.s32.totalorder %s37, 0
      %p232 = por %p230, %p231
      %s234 = sadd.s32 %s233, 1
      %p237 = scmp.eq.s32.totalorder %s31, 1
      %p238 = scmp.ne.s32.totalorder %s233, %s235
      %p239 = scmp.eq.s32.totalorder %s31, 0
      %p240 = por %p238, %p239
      %p241 = scmp.ne.s32.totalorder %s233, %s235
      %p242 = scmp.eq.s32.totalorder %s36, 1
      %p243 = por %p241, %p242
      %p244 = scmp.ne.s32.totalorder %s235, %s236
      %p245 = scmp.eq.s32.totalorder %s36, 0
      %p246 = por %p244, %p245
      %p247 = scmp.ne.s32.totalorder %s235, %s236
      %p248 = scmp.eq.s32.totalorder %s37, 1
      %p249 = por %p247, %p248
      %p251 = scmp.ne.s32.totalorder %s236, %s250
      %p252 = scmp.eq.s32.totalorder %s37, 0
      %p253 = por %p251, %p252
      %s255 = sadd.s32 %s254, 1
      %p258 = scmp.eq.s32.totalorder %s31, 1
      %p259 = scmp.ne.s32.totalorder %s254, %s256
      %p260 = scmp.eq.s32.totalorder %s31, 0
      %p261 = por %p259, %p260
      %p262 = scmp.ne.s32.totalorder %s254, %s256
      %p263 = scmp.eq.s32.totalorder %s36, 1
      %p264 = por %p262, %p263
      %p265 = scmp.ne.s32.totalorder %s256, %s257
      %p266 = scmp.eq.s32.totalorder %s36, 0
      %p267 = por %p265, %p266
      %p268 = scmp.ne.s32.totalorder %s256, %s257
      %p269 = scmp.eq.s32.totalorder %s37, 1
      %p270 = por %p268, %p269
      %p272 = scmp.ne.s32.totalorder %s257, %s271
      %p273 = scmp.eq.s32.totalorder %s37, 0
      %p274 = por %p272, %p273
      %s275 = ssub.s32 %s31, %s38
      %p276 = scmp.eq.s32.totalorder %s275, 0
      %s278 = sadd.s32 %s277, 1
      %s279 = scalar_select %p276, %s277, %s278
      %p282 = pneg %p276
      %p283 = scmp.eq.s32.totalorder %s31, 1
      %p284 = por %p282, %p283
      %p285 = scmp.ne.s32.totalorder %s277, %s280
      %p286 = scmp.eq.s32.totalorder %s31, 0
      %p287 = por %p285, %p286
      %p288 = scmp.ne.s32.totalorder %s277, %s280
      %p289 = scmp.eq.s32.totalorder %s36, 1
      %p290 = por %p288, %p289
      %p291 = scmp.ne.s32.totalorder %s280, %s281
      %p292 = scmp.eq.s32.totalorder %s36, 0
      %p293 = por %p291, %p292
      %p294 = scmp.ne.s32.totalorder %s280, %s281
      %p295 = scmp.eq.s32.totalorder %s37, 1
      %p296 = por %p294, %p295
      %p298 = scmp.ne.s32.totalorder %s281, %s297
      %p299 = scmp.eq.s32.totalorder %s37, 0
      %p300 = por %p298, %p299
      %s301 = ssub.s32 %s31, %s38
      %p302 = scmp.eq.s32.totalorder %s301, 0
      %s304 = sadd.s32 %s303, 1
      %s305 = scalar_select %p302, %s303, %s304
      %p308 = pneg %p302
      %p309 = scmp.eq.s32.totalorder %s31, 1
      %p310 = por %p308, %p309
      %p311 = scmp.ne.s32.totalorder %s303, %s306
      %p312 = scmp.eq.s32.totalorder %s31, 0
      %p313 = por %p311, %p312
      %p314 = scmp.ne.s32.totalorder %s303, %s306
      %p315 = scmp.eq.s32.totalorder %s36, 1
      %p316 = por %p314, %p315
      %p317 = scmp.ne.s32.totalorder %s306, %s307
      %p318 = scmp.eq.s32.totalorder %s36, 0
      %p319 = por %p317, %p318
      %p320 = scmp.ne.s32.totalorder %s306, %s307
      %p321 = scmp.eq.s32.totalorder %s37, 1
      %p322 = por %p320, %p321
      %p324 = scmp.ne.s32.totalorder %s307, %s323
      %p325 = scmp.eq.s32.totalorder %s37, 0
      %p326 = por %p324, %p325
      %p327 = scmp.le.s32.totalorder 1, %s31
      %p328 = scmp.lt.s32.totalorder %s31, 3
      %p329 = pnand %p327, %p328
      %p330 = pneg %p329
      // Predicated region
      $region9: #{tpu_custom_call.1} parent=5 // pred_check
        _
      $region10: #{tpu_custom_call.1} parent=5 // pred_check_branch
        %332 = sbr.rel (%p329) target = $region12
      $region11: #{tpu_custom_call.1} parent=5 // pred_region
        %s333 = ssub.s32 %s31, 1
        // Predicated region
        $region13: #{tpu_custom_call.1} parent=11 // pred_check
          %p334 = pneg %p78
        $region14: #{tpu_custom_call.1} parent=11 // pred_check_branch
          %336 = sbr.rel (%p334) target = $region16
        $region15: #{tpu_custom_call.1} parent=11 // pred_region
          %s338 = ssub.s32 1024, 1024
          %339 = vsyncadd [#allocation6], %s338
          %s340 = sshll.u32 [#allocation5], 4
          %s341 = int_to_ptr.vmem [resolvable:$true] %s340
          %346 = dma.hbm_to_vmem [thread:$0]  %s1, 1024, %s341, [#allocation6], 64, 64, 4
        $region16: #{tpu_custom_call.1} parent=11 // pred_fallthru
          _
        // Predicated region
        $region17: #{tpu_custom_call.1} parent=11 // pred_check
          %p347 = pneg %p99
        $region18: #{tpu_custom_call.1} parent=11 // pred_check_branch
          %349 = sbr.rel (%p347) target = $region20
        $region19: #{tpu_custom_call.1} parent=11 // pred_region
          _
        $region20: #{tpu_custom_call.1} parent=11 // pred_fallthru
          _
        // Predicated region
        $region21: #{tpu_custom_call.1} parent=11 // pred_check
          %p350 = pneg %p120
        $region22: #{tpu_custom_call.1} parent=11 // pred_check_branch
          %352 = sbr.rel (%p350) target = $region24
        $region23: #{tpu_custom_call.1} parent=11 // pred_region
          %s354 = ssub.s32 1024, 1024
          %355 = vsyncadd [#allocation6], %s354
          %s356 = sshll.u32 [#allocation7], 4
          %s357 = int_to_ptr.vmem [resolvable:$true] %s356
          %362 = dma.hbm_to_vmem [thread:$0]  %s3, 1024, %s357, [#allocation6], 64, 64, 4
        $region24: #{tpu_custom_call.1} parent=11 // pred_fallthru
          _
        // Predicated region
        $region25: #{tpu_custom_call.1} parent=11 // pred_check
          %p363 = pneg %p141
        $region26: #{tpu_custom_call.1} parent=11 // pred_check_branch
          %365 = sbr.rel (%p363) target = $region28
        $region27: #{tpu_custom_call.1} parent=11 // pred_region
          _
        $region28: #{tpu_custom_call.1} parent=11 // pred_fallthru
          _
        // Predicated region
        $region29: #{tpu_custom_call.1} parent=11 // pred_check
          %p366 = pneg %p162
        $region30: #{tpu_custom_call.1} parent=11 // pred_check_branch
          %368 = sbr.rel (%p366) target = $region32
        $region31: #{tpu_custom_call.1} parent=11 // pred_region
          %s370 = ssub.s32 2048, 2048
          %371 = vsyncadd [#allocation9], %s370
          %s372 = sshll.u32 [#allocation8], 4
          %s373 = int_to_ptr.vmem [resolvable:$true] %s372
          %378 = dma.hbm_to_vmem [thread:$0]  %s5, 2048, %s373, [#allocation9], 128, 128, 8
        $region32: #{tpu_custom_call.1} parent=11 // pred_fallthru
          _
        // Predicated region
        $region33: #{tpu_custom_call.1} parent=11 // pred_check
          %p379 = pneg %p183
        $region34: #{tpu_custom_call.1} parent=11 // pred_check_branch
          %381 = sbr.rel (%p379) target = $region36
        $region35: #{tpu_custom_call.1} parent=11 // pred_region
          _
        $region36: #{tpu_custom_call.1} parent=11 // pred_fallthru
          _
        // Predicated region
        $region37: #{tpu_custom_call.1} parent=11 // pred_check
          %p382 = pneg %p204
        $region38: #{tpu_custom_call.1} parent=11 // pred_check_branch
          %384 = sbr.rel (%p382) target = $region40
        $region39: #{tpu_custom_call.1} parent=11 // pred_region
          %s386 = ssub.s32 2048, 2048
          %387 = vsyncadd [#allocation9], %s386
          %s388 = sshll.u32 [#allocation10], 4
          %s389 = int_to_ptr.vmem [resolvable:$true] %s388
          %394 = dma.hbm_to_vmem [thread:$0]  %s7, 2048, %s389, [#allocation9], 64, 64, 4
        $region40: #{tpu_custom_call.1} parent=11 // pred_fallthru
          _
        // Predicated region
        $region41: #{tpu_custom_call.1} parent=11 // pred_check
          %p395 = pneg %p225
        $region42: #{tpu_custom_call.1} parent=11 // pred_check_branch
          %397 = sbr.rel (%p395) target = $region44
        $region43: #{tpu_custom_call.1} parent=11 // pred_region
          _
        $region44: #{tpu_custom_call.1} parent=11 // pred_fallthru
          _
        // Predicated region
        $region45: #{tpu_custom_call.1} parent=11 // pred_check
          %p398 = pneg %p246
        $region46: #{tpu_custom_call.1} parent=11 // pred_check_branch
          %400 = sbr.rel (%p398) target = $region48
        $region47: #{tpu_custom_call.1} parent=11 // pred_region
          %s402 = ssub.s32 1024, 1024
          %403 = vsyncadd [#allocation12], %s402
          %s404 = sshll.u32 [#allocation11], 4
          %s405 = int_to_ptr.vmem [resolvable:$true] %s404
          %410 = dma.hbm_to_vmem [thread:$0]  %s9, 1024, %s405, [#allocation12], 64, 64, 4
        $region48: #{tpu_custom_call.1} parent=11 // pred_fallthru
          _
        // Predicated region
        $region49: #{tpu_custom_call.1} parent=11 // pred_check
          %p411 = pneg %p267
        $region50: #{tpu_custom_call.1} parent=11 // pred_check_branch
          %413 = sbr.rel (%p411) target = $region52
        $region51: #{tpu_custom_call.1} parent=11 // pred_region
          _
        $region52: #{tpu_custom_call.1} parent=11 // pred_fallthru
          _
      $region12: #{tpu_custom_call.1} parent=5 // pred_fallthru
        _
      %p414 = scmp.lt.s32.totalorder %s31, 2
      // Predicated region
      $region53: #{tpu_custom_call.1} parent=5 // pred_check
        %p415 = pneg %p414
      $region54: #{tpu_custom_call.1} parent=5 // pred_check_branch
        %417 = sbr.rel (%p415) target = $region56
      $region55: #{tpu_custom_call.1} parent=5 // pred_region
        // Predicated region
        $region57: #{tpu_custom_call.1} parent=55 // pred_check
          %p418 = pneg %p51
        $region58: #{tpu_custom_call.1} parent=55 // pred_check_branch
          %420 = sbr.rel (%p418) target = $region60
        $region59: #{tpu_custom_call.1} parent=55 // pred_region
          %s421 = sand.u32 %s41, 1
          %s422 = scalar_lea.sflag [#allocation3], %s421
          %s423 = sand.u32 %s41, 1
          %s424 = smul.addr %s423, 128
          %s425 = scalar_lea.vmem [#allocation2], %s424
          %s426 = smul.u32 32, %s31
          %s428 = ssub.s32 2048, 2048
          %429 = vsyncadd %s422, %s428
          %s430 = smul.addr %s426, 64
          %s431 = scalar_lea.hbm %s0, %s430
          %s432 = sshll.u32 %s425, 4
          %s433 = int_to_ptr.vmem [resolvable:$true] %s432
          %438 = dma.hbm_to_vmem [thread:$0]  %s431, 2048, %s433, %s422, 64, 64, 4
        $region60: #{tpu_custom_call.1} parent=55 // pred_fallthru
          _
      $region56: #{tpu_custom_call.1} parent=5 // pred_fallthru
        _
      %p439 = scmp.le.s32.totalorder 1, %s31
      %p440 = scmp.lt.s32.totalorder %s31, 3
      %p441 = pnand %p439, %p440
      %p442 = pneg %p441
      // Predicated region
      $region61: #{tpu_custom_call.1} parent=5 // pred_check
        _
      $region62: #{tpu_custom_call.1} parent=5 // pred_check_branch
        %444 = sbr.rel (%p441) target = $region64
      $region63: #{tpu_custom_call.1} parent=5 // pred_region
        %s445 = ssub.s32 %s31, 1
        %s446 = sand.u32 %s44, 1
        %s447 = scalar_lea.sflag [#allocation3], %s446
        %s448 = sand.u32 %s44, 1
        %s449 = smul.addr %s448, 128
        %s450 = scalar_lea.vmem [#allocation2], %s449
        // Predicated region
        $region65: #{tpu_custom_call.1} parent=63 // pred_check
          %p451 = pneg %p57
        $region66: #{tpu_custom_call.1} parent=63 // pred_check_branch
          %453 = sbr.rel (%p451) target = $region68
        $region67: #{tpu_custom_call.1} parent=63 // pred_region
          %454 = dma.done %s447, 2048
        $region68: #{tpu_custom_call.1} parent=63 // pred_fallthru
          _
        // Predicated region
        $region69: #{tpu_custom_call.1} parent=63 // pred_check
          %p455 = pneg %p78
        $region70: #{tpu_custom_call.1} parent=63 // pred_check_branch
          %457 = sbr.rel (%p455) target = $region72
        $region71: #{tpu_custom_call.1} parent=63 // pred_region
          %458 = dma.done [#allocation6], 1024
        $region72: #{tpu_custom_call.1} parent=63 // pred_fallthru
          _
        // Predicated region
        $region73: #{tpu_custom_call.1} parent=63 // pred_check
          %p459 = pneg %p120
        $region74: #{tpu_custom_call.1} parent=63 // pred_check_branch
          %461 = sbr.rel (%p459) target = $region76
        $region75: #{tpu_custom_call.1} parent=63 // pred_region
          %462 = dma.done [#allocation6], 1024
        $region76: #{tpu_custom_call.1} parent=63 // pred_fallthru
          _
        // Predicated region
        $region77: #{tpu_custom_call.1} parent=63 // pred_check
          %p463 = pneg %p162
        $region78: #{tpu_custom_call.1} parent=63 // pred_check_branch
          %465 = sbr.rel (%p463) target = $region80
        $region79: #{tpu_custom_call.1} parent=63 // pred_region
          %466 = dma.done [#allocation9], 2048
        $region80: #{tpu_custom_call.1} parent=63 // pred_fallthru
          _
        // Predicated region
        $region81: #{tpu_custom_call.1} parent=63 // pred_check
          %p467 = pneg %p204
        $region82: #{tpu_custom_call.1} parent=63 // pred_check_branch
          %469 = sbr.rel (%p467) target = $region84
        $region83: #{tpu_custom_call.1} parent=63 // pred_region
          %470 = dma.done [#allocation9], 2048
        $region84: #{tpu_custom_call.1} parent=63 // pred_fallthru
          _
        // Predicated region
        $region85: #{tpu_custom_call.1} parent=63 // pred_check
          %p471 = pneg %p246
        $region86: #{tpu_custom_call.1} parent=63 // pred_check_branch
          %473 = sbr.rel (%p471) target = $region88
        $region87: #{tpu_custom_call.1} parent=63 // pred_region
          %474 = dma.done [#allocation12], 1024
        $region88: #{tpu_custom_call.1} parent=63 // pred_fallthru
          _
        %s475 = sand.u32 %s44, 1
        %s476 = scalar_lea.sflag [#allocation3], %s475
        %s477 = sand.u32 %s44, 1
        %s478 = smul.addr %s477, 128
        %s479 = scalar_lea.vmem [#allocation2], %s478
        %p480 = pneg %p57
        %p481 = pneg %p54
        %p482 = pneg %p78
        %p483 = pneg %p75
        %p484 = pneg %p99
        %p485 = pneg %p96
        %p486 = pneg %p120
        %p487 = pneg %p117
        %p488 = pneg %p141
        %p489 = pneg %p138
        %p490 = pneg %p162
        %p491 = pneg %p159
        %p492 = pneg %p183
        %p493 = pneg %p180
        %p494 = pneg %p204
        %p495 = pneg %p201
        %p496 = pneg %p225
        %p497 = pneg %p222
        %p498 = pneg %p246
        %p499 = pneg %p243
        %p500 = pneg %p267
        %p501 = pneg %p264
        %p502 = pneg %p293
        %p503 = pneg %p290
        %s504 = sand.u32 %s280, 1
        %s505 = scalar_lea.sflag [#allocation4], %s504
        %s506 = sand.u32 %s280, 1
        %s507 = smul.addr %s506, 256
        %s508 = scalar_lea.vmem [#allocation13], %s507
        %p509 = pneg %p319
        %p510 = pneg %p316
        %s511 = sand.u32 %s306, 1
        %s512 = scalar_lea.sflag [#allocation15], %s511
        %s513 = sand.u32 %s306, 1
        %s514 = smul.addr %s513, 256
        %s515 = scalar_lea.vmem [#allocation14], %s514
        %s516 = smul.u32 32, %s36
        %s517 = smul.u32 32, %s36
        %s518 = smul.u32 32, %s36
        %v520 = vld [vmem:[%s450] sm:$0xf]
        %v521 = vld [vmem:[%s450 + $0x4] sm:$0xf]
        %v522 = vld [vmem:[%s450 + $0x8] sm:$0xf]
        %v523 = vld [vmem:[%s450 + $0xc] sm:$0xf]
        %v524 = vld [vmem:[%s450 + $0x10] sm:$0xf]
        %v525 = vld [vmem:[%s450 + $0x14] sm:$0xf]
        %v526 = vld [vmem:[%s450 + $0x18] sm:$0xf]
        %v527 = vld [vmem:[%s450 + $0x1c] sm:$0xf]
        %v528 = vld [vmem:[%s450 + $0x20] sm:$0xf]
        %v529 = vld [vmem:[%s450 + $0x24] sm:$0xf]
        %v530 = vld [vmem:[%s450 + $0x28] sm:$0xf]
        %v531 = vld [vmem:[%s450 + $0x2c] sm:$0xf]
        %v532 = vld [vmem:[%s450 + $0x30] sm:$0xf]
        %v533 = vld [vmem:[%s450 + $0x34] sm:$0xf]
        %v534 = vld [vmem:[%s450 + $0x38] sm:$0xf]
        %v535 = vld [vmem:[%s450 + $0x3c] sm:$0xf]
        %v536 = vld [vmem:[%s450 + $0x40] sm:$0xf]
        %v537 = vld [vmem:[%s450 + $0x44] sm:$0xf]
        %v538 = vld [vmem:[%s450 + $0x48] sm:$0xf]
        %v539 = vld [vmem:[%s450 + $0x4c] sm:$0xf]
        %v540 = vld [vmem:[%s450 + $0x50] sm:$0xf]
        %v541 = vld [vmem:[%s450 + $0x54] sm:$0xf]
        %v542 = vld [vmem:[%s450 + $0x58] sm:$0xf]
        %v543 = vld [vmem:[%s450 + $0x5c] sm:$0xf]
        %v544 = vld [vmem:[%s450 + $0x60] sm:$0xf]
        %v545 = vld [vmem:[%s450 + $0x64] sm:$0xf]
        %v546 = vld [vmem:[%s450 + $0x68] sm:$0xf]
        %v547 = vld [vmem:[%s450 + $0x6c] sm:$0xf]
        %v548 = vld [vmem:[%s450 + $0x70] sm:$0xf]
        %v549 = vld [vmem:[%s450 + $0x74] sm:$0xf]
        %v550 = vld [vmem:[%s450 + $0x78] sm:$0xf]
        %v551 = vld [vmem:[%s450 + $0x7c] sm:$0xf]
        %v552 = vld [vmem:[#allocation5] sm:$0xf]
        %v553 = vld [vmem:[#allocation5 + $0x4] sm:$0xf]
        %v554 = vld [vmem:[#allocation5 + $0x8] sm:$0xf]
        %v555 = vld [vmem:[#allocation5 + $0xc] sm:$0xf]
        %v556 = vld [vmem:[#allocation5 + $0x10] sm:$0xf]
        %v557 = vld [vmem:[#allocation5 + $0x14] sm:$0xf]
        %v558 = vld [vmem:[#allocation5 + $0x18] sm:$0xf]
        %v559 = vld [vmem:[#allocation5 + $0x1c] sm:$0xf]
        %v560 = vld [vmem:[#allocation5 + $0x20] sm:$0xf]
        %v561 = vld [vmem:[#allocation5 + $0x24] sm:$0xf]
        %v562 = vld [vmem:[#allocation5 + $0x28] sm:$0xf]
        %v563 = vld [vmem:[#allocation5 + $0x2c] sm:$0xf]
        %v564 = vld [vmem:[#allocation5 + $0x30] sm:$0xf]
        %v565 = vld [vmem:[#allocation5 + $0x34] sm:$0xf]
        %v566 = vld [vmem:[#allocation5 + $0x38] sm:$0xf]
        %v567 = vld [vmem:[#allocation5 + $0x3c] sm:$0xf]
        %v568 = vld [vmem:[%s2] sm:$0x1]
        %v570 = vlaneseq
        %v571 = vshrl.u32 %v570, 7
        %v572 = vsub.s32 0, %v571
        %v573 = vrot.slane %v568, %v572
        %v607 = vunpack.c.l.b16 %v520
        %v608 = vunpack.c.l.b16 %v521
        %v609 = vunpack.c.l.b16 %v522
        %v610 = vunpack.c.l.b16 %v523
        %v611 = vunpack.c.l.b16 %v524
        %v612 = vunpack.c.l.b16 %v525
        %v613 = vunpack.c.l.b16 %v526
        %v614 = vunpack.c.l.b16 %v527
        %v615 = vunpack.c.l.b16 %v528
        %v616 = vunpack.c.l.b16 %v529
        %v617 = vunpack.c.l.b16 %v530
        %v618 = vunpack.c.l.b16 %v531
        %v619 = vunpack.c.l.b16 %v532
        %v620 = vunpack.c.l.b16 %v533
        %v621 = vunpack.c.l.b16 %v534
        %v622 = vunpack.c.l.b16 %v535
        %v623 = vunpack.c.l.b16 %v536
        %v624 = vunpack.c.l.b16 %v537
        %v625 = vunpack.c.l.b16 %v538
        %v626 = vunpack.c.l.b16 %v539
        %v627 = vunpack.c.l.b16 %v540
        %v628 = vunpack.c.l.b16 %v541
        %v629 = vunpack.c.l.b16 %v542
        %v630 = vunpack.c.l.b16 %v543
        %v631 = vunpack.c.l.b16 %v544
        %v632 = vunpack.c.l.b16 %v545
        %v633 = vunpack.c.l.b16 %v546
        %v634 = vunpack.c.l.b16 %v547
        %v635 = vunpack.c.l.b16 %v548
        %v636 = vunpack.c.l.b16 %v549
        %v637 = vunpack.c.l.b16 %v550
        %v638 = vunpack.c.l.b16 %v551
        %v639 = vpack.c.b16 %v608, %v607
        %v640 = vpack.c.b16 %v610, %v609
        %v641 = vpack.c.b16 %v612, %v611
        %v642 = vpack.c.b16 %v614, %v613
        %v643 = vpack.c.b16 %v616, %v615
        %v644 = vpack.c.b16 %v618, %v617
        %v645 = vpack.c.b16 %v620, %v619
        %v646 = vpack.c.b16 %v622, %v621
        %v647 = vpack.c.b16 %v624, %v623
        %v648 = vpack.c.b16 %v626, %v625
        %v649 = vpack.c.b16 %v628, %v627
        %v650 = vpack.c.b16 %v630, %v629
        %v651 = vpack.c.b16 %v632, %v631
        %v652 = vpack.c.b16 %v634, %v633
        %v653 = vpack.c.b16 %v636, %v635
        %v654 = vpack.c.b16 %v638, %v637
        %v687 = vunpack.c.l.b16 %v552
        %v688 = vunpack.c.l.b16 %v553
        %v689 = vunpack.c.l.b16 %v554
        %v690 = vunpack.c.l.b16 %v555
        %v691 = vunpack.c.l.b16 %v556
        %v692 = vunpack.c.l.b16 %v557
        %v693 = vunpack.c.l.b16 %v558
        %v694 = vunpack.c.l.b16 %v559
        %v695 = vunpack.c.l.b16 %v560
        %v696 = vunpack.c.l.b16 %v561
        %v697 = vunpack.c.l.b16 %v562
        %v698 = vunpack.c.l.b16 %v563
        %v699 = vunpack.c.l.b16 %v564
        %v700 = vunpack.c.l.b16 %v565
        %v701 = vunpack.c.l.b16 %v566
        %v702 = vunpack.c.l.b16 %v567
        %v703 = vpack.c.b16 %v688, %v687
        %v704 = vpack.c.b16 %v690, %v689
        %v705 = vpack.c.b16 %v692, %v691
        %v706 = vpack.c.b16 %v694, %v693
        %v707 = vpack.c.b16 %v696, %v695
        %v708 = vpack.c.b16 %v698, %v697
        %v709 = vpack.c.b16 %v700, %v699
        %v710 = vpack.c.b16 %v702, %v701
        %719 = vmatprep.subr.bf16.mxu0 0
        %720 = vmatpush1.bf16.msra.mxu0 %v703
        %721 = vmatprep.subr.bf16.mxu0 0
        %722 = vmatpush1.bf16.msra.mxu0 %v704
        %723 = vmatprep.subr.bf16.mxu0 0
        %724 = vmatpush1.bf16.msra.mxu0 %v705
        %725 = vmatprep.subr.bf16.mxu0 0
        %726 = vmatpush1.bf16.msra.mxu0 %v706
        %727 = vmatprep.subr.bf16.mxu0 0
        %728 = vmatpush1.bf16.msra.mxu0 %v707
        %729 = vmatprep.subr.bf16.mxu0 0
        %730 = vmatpush1.bf16.msra.mxu0 %v708
        %731 = vmatprep.subr.bf16.mxu0 0
        %732 = vmatpush1.bf16.msra.mxu0 %v709
        %733 = vmatprep.subr.bf16.mxu0 0
        %734 = vmatpush1.bf16.msra.mxu0 %v710
        %735 = vmatprep.subr.bf16.mxu0 0
        %736 = vmatpush1.bf16.msra.mxu0 0
        %737 = vmatprep.subr.bf16.mxu0 0
        %738 = vmatpush1.bf16.msra.mxu0 0
        %739 = vmatprep.subr.bf16.mxu0 0
        %740 = vmatpush1.bf16.msra.mxu0 0
        %741 = vmatprep.subr.bf16.mxu0 0
        %742 = vmatpush1.bf16.msra.mxu0 0
        %743 = vmatprep.subr.bf16.mxu0 0
        %744 = vmatpush1.bf16.msra.mxu0 0
        %745 = vmatprep.subr.bf16.mxu0 0
        %746 = vmatpush1.bf16.msra.mxu0 0
        %747 = vmatprep.subr.bf16.mxu0 0
        %748 = vmatpush1.bf16.msra.mxu0 0
        %749 = vmatprep.subr.bf16.mxu0 0
        %750 = vmatpush1.bf16.msra.mxu0 0
        %751 = vmatprep.mubr.bf16.mxu0 0
        %752 = vmatmul.mubr.bf16.gmra.mrb[0].mxu0 %v639
        %v753 = vpop.f32.mrb[0].mxu0
        %v754 = vadd.f32 %v573, %v753
        %v755 = vpop.f32.mrb[0].mxu0
        %v756 = vpop.f32.mrb[0].mxu0
        %v757 = vadd.f32 %v573, %v756
        %v758 = vpop.f32.mrb[0].mxu0
        %759 = vmatprep.mubr.bf16.mxu0 0
        %760 = vmatmul.mubr.bf16.gmra.mrb[0].mxu0 %v640
        %v761 = vpop.f32.mrb[0].mxu0
        %v762 = vadd.f32 %v573, %v761
        %v763 = vpop.f32.mrb[0].mxu0
        %v764 = vpop.f32.mrb[0].mxu0
        %v765 = vadd.f32 %v573, %v764
        %v766 = vpop.f32.mrb[0].mxu0
        %767 = vmatprep.mubr.bf16.mxu0 0
        %768 = vmatmul.mubr.bf16.gmra.mrb[0].mxu0 %v641
        %v769 = vpop.f32.mrb[0].mxu0
        %v770 = vadd.f32 %v573, %v769
        %v771 = vpop.f32.mrb[0].mxu0
        %v772 = vpop.f32.mrb[0].mxu0
        %v773 = vadd.f32 %v573, %v772
        %v774 = vpop.f32.mrb[0].mxu0
        %775 = vmatprep.mubr.bf16.mxu0 0
        %776 = vmatmul.mubr.bf16.gmra.mrb[0].mxu0 %v642
        %v777 = vpop.f32.mrb[0].mxu0
        %v778 = vadd.f32 %v573, %v777
        %v779 = vpop.f32.mrb[0].mxu0
        %v780 = vpop.f32.mrb[0].mxu0
        %v781 = vadd.f32 %v573, %v780
        %v782 = vpop.f32.mrb[0].mxu0
        %783 = vmatprep.mubr.bf16.mxu0 0
        %784 = vmatmul.mubr.bf16.gmra.mrb[0].mxu0 %v643
        %v785 = vpop.f32.mrb[0].mxu0
        %v786 = vadd.f32 %v573, %v785
        %v787 = vpop.f32.mrb[0].mxu0
        %v788 = vpop.f32.mrb[0].mxu0
        %v789 = vadd.f32 %v573, %v788
        %v790 = vpop.f32.mrb[0].mxu0
        %791 = vmatprep.mubr.bf16.mxu0 0
        %792 = vmatmul.mubr.bf16.gmra.mrb[0].mxu0 %v644
        %v793 = vpop.f32.mrb[0].mxu0
        %v794 = vadd.f32 %v573, %v793
        %v795 = vpop.f32.mrb[0].mxu0
        %v796 = vpop.f32.mrb[0].mxu0
        %v797 = vadd.f32 %v573, %v796
        %v798 = vpop.f32.mrb[0].mxu0
        %799 = vmatprep.mubr.bf16.mxu0 0
        %800 = vmatmul.mubr.bf16.gmra.mrb[0].mxu0 %v645
        %v801 = vpop.f32.mrb[0].mxu0
        %v802 = vadd.f32 %v573, %v801
        %v803 = vpop.f32.mrb[0].mxu0
        %v804 = vpop.f32.mrb[0].mxu0
        %v805 = vadd.f32 %v573, %v804
        %v806 = vpop.f32.mrb[0].mxu0
        %807 = vmatprep.mubr.bf16.mxu0 0
        %808 = vmatmul.mubr.bf16.gmra.mrb[0].mxu0 %v646
        %v809 = vpop.f32.mrb[0].mxu0
        %v810 = vadd.f32 %v573, %v809
        %v811 = vpop.f32.mrb[0].mxu0
        %v812 = vpop.f32.mrb[0].mxu0
        %v813 = vadd.f32 %v573, %v812
        %v814 = vpop.f32.mrb[0].mxu0
        %815 = vmatprep.mubr.bf16.mxu0 0
        %816 = vmatmul.mubr.bf16.gmra.mrb[0].mxu0 %v647
        %v817 = vpop.f32.mrb[0].mxu0
        %v818 = vadd.f32 %v573, %v817
        %v819 = vpop.f32.mrb[0].mxu0
        %v820 = vpop.f32.mrb[0].mxu0
        %v821 = vadd.f32 %v573, %v820
        %v822 = vpop.f32.mrb[0].mxu0
        %823 = vmatprep.mubr.bf16.mxu0 0
        %824 = vmatmul.mubr.bf16.gmra.mrb[0].mxu0 %v648
        %v825 = vpop.f32.mrb[0].mxu0
        %v826 = vadd.f32 %v573, %v825
        %v827 = vpop.f32.mrb[0].mxu0
        %v828 = vpop.f32.mrb[0].mxu0
        %v829 = vadd.f32 %v573, %v828
        %v830 = vpop.f32.mrb[0].mxu0
        %831 = vmatprep.mubr.bf16.mxu0 0
        %832 = vmatmul.mubr.bf16.gmra.mrb[0].mxu0 %v649
        %v833 = vpop.f32.mrb[0].mxu0
        %v834 = vadd.f32 %v573, %v833
        %v835 = vpop.f32.mrb[0].mxu0
        %v836 = vpop.f32.mrb[0].mxu0
        %v837 = vadd.f32 %v573, %v836
        %v838 = vpop.f32.mrb[0].mxu0
        %839 = vmatprep.mubr.bf16.mxu0 0
        %840 = vmatmul.mubr.bf16.gmra.mrb[0].mxu0 %v650
        %v841 = vpop.f32.mrb[0].mxu0
        %v842 = vadd.f32 %v573, %v841
        %v843 = vpop.f32.mrb[0].mxu0
        %v844 = vpop.f32.mrb[0].mxu0
        %v845 = vadd.f32 %v573, %v844
        %v846 = vpop.f32.mrb[0].mxu0
        %847 = vmatprep.mubr.bf16.mxu0 0
        %848 = vmatmul.mubr.bf16.gmra.mrb[0].mxu0 %v651
        %v849 = vpop.f32.mrb[0].mxu0
        %v850 = vadd.f32 %v573, %v849
        %v851 = vpop.f32.mrb[0].mxu0
        %v852 = vpop.f32.mrb[0].mxu0
        %v853 = vadd.f32 %v573, %v852
        %v854 = vpop.f32.mrb[0].mxu0
        %855 = vmatprep.mubr.bf16.mxu0 0
        %856 = vmatmul.mubr.bf16.gmra.mrb[0].mxu0 %v652
        %v857 = vpop.f32.mrb[0].mxu0
        %v858 = vadd.f32 %v573, %v857
        %v859 = vpop.f32.mrb[0].mxu0
        %v860 = vpop.f32.mrb[0].mxu0
        %v861 = vadd.f32 %v573, %v860
        %v862 = vpop.f32.mrb[0].mxu0
        %863 = vmatprep.mubr.bf16.mxu0 0
        %864 = vmatmul.mubr.bf16.gmra.mrb[0].mxu0 %v653
        %v865 = vpop.f32.mrb[0].mxu0
        %v866 = vadd.f32 %v573, %v865
        %v867 = vpop.f32.mrb[0].mxu0
        %v868 = vpop.f32.mrb[0].mxu0
        %v869 = vadd.f32 %v573, %v868
        %v870 = vpop.f32.mrb[0].mxu0
        %871 = vmatprep.mubr.bf16.mxu0 0
        %872 = vmatmul.mubr.bf16.gmra.mrb[0].mxu0 %v654
        %v873 = vpop.f32.mrb[0].mxu0
        %v874 = vadd.f32 %v573, %v873
        %v875 = vpop.f32.mrb[0].mxu0
        %v876 = vpop.f32.mrb[0].mxu0
        %v877 = vadd.f32 %v573, %v876
        %v878 = vpop.f32.mrb[0].mxu0
        %879 = vdwg.mxu0
        %v880 = vmax.f32 %v754, 0.0
        %v881 = vmax.f32 %v757, 0.0
        %v882 = vmax.f32 %v762, 0.0
        %v883 = vmax.f32 %v765, 0.0
        %v884 = vmax.f32 %v770, 0.0
        %v885 = vmax.f32 %v773, 0.0
        %v886 = vmax.f32 %v778, 0.0
        %v887 = vmax.f32 %v781, 0.0
        %v888 = vmax.f32 %v786, 0.0
        %v889 = vmax.f32 %v789, 0.0
        %v890 = vmax.f32 %v794, 0.0
        %v891 = vmax.f32 %v797, 0.0
        %v892 = vmax.f32 %v802, 0.0
        %v893 = vmax.f32 %v805, 0.0
        %v894 = vmax.f32 %v810, 0.0
        %v895 = vmax.f32 %v813, 0.0
        %v896 = vmax.f32 %v818, 0.0
        %v897 = vmax.f32 %v821, 0.0
        %v898 = vmax.f32 %v826, 0.0
        %v899 = vmax.f32 %v829, 0.0
        %v900 = vmax.f32 %v834, 0.0
        %v901 = vmax.f32 %v837, 0.0
        %v902 = vmax.f32 %v842, 0.0
        %v903 = vmax.f32 %v845, 0.0
        %v904 = vmax.f32 %v850, 0.0
        %v905 = vmax.f32 %v853, 0.0
        %v906 = vmax.f32 %v858, 0.0
        %v907 = vmax.f32 %v861, 0.0
        %v908 = vmax.f32 %v866, 0.0
        %v909 = vmax.f32 %v869, 0.0
        %v910 = vmax.f32 %v874, 0.0
        %v911 = vmax.f32 %v877, 0.0
        %v912 = vpack.c.bf16 %v881, %v880
        %v913 = vpack.c.bf16 %v883, %v882
        %v914 = vpack.c.bf16 %v885, %v884
        %v915 = vpack.c.bf16 %v887, %v886
        %v916 = vpack.c.bf16 %v889, %v888
        %v917 = vpack.c.bf16 %v891, %v890
        %v918 = vpack.c.bf16 %v893, %v892
        %v919 = vpack.c.bf16 %v895, %v894
        %v920 = vpack.c.bf16 %v897, %v896
        %v921 = vpack.c.bf16 %v899, %v898
        %v922 = vpack.c.bf16 %v901, %v900
        %v923 = vpack.c.bf16 %v903, %v902
        %v924 = vpack.c.bf16 %v905, %v904
        %v925 = vpack.c.bf16 %v907, %v906
        %v926 = vpack.c.bf16 %v909, %v908
        %v927 = vpack.c.bf16 %v911, %v910
        %v928 = vld [vmem:[#allocation7] sm:$0xf]
        %v929 = vld [vmem:[#allocation7 + $0x4] sm:$0xf]
        %v930 = vld [vmem:[#allocation7 + $0x8] sm:$0xf]
        %v931 = vld [vmem:[#allocation7 + $0xc] sm:$0xf]
        %v932 = vld [vmem:[#allocation7 + $0x10] sm:$0xf]
        %v933 = vld [vmem:[#allocation7 + $0x14] sm:$0xf]
        %v934 = vld [vmem:[#allocation7 + $0x18] sm:$0xf]
        %v935 = vld [vmem:[#allocation7 + $0x1c] sm:$0xf]
        %v936 = vld [vmem:[#allocation7 + $0x20] sm:$0xf]
        %v937 = vld [vmem:[#allocation7 + $0x24] sm:$0xf]
        %v938 = vld [vmem:[#allocation7 + $0x28] sm:$0xf]
        %v939 = vld [vmem:[#allocation7 + $0x2c] sm:$0xf]
        %v940 = vld [vmem:[#allocation7 + $0x30] sm:$0xf]
        %v941 = vld [vmem:[#allocation7 + $0x34] sm:$0xf]
        %v942 = vld [vmem:[#allocation7 + $0x38] sm:$0xf]
        %v943 = vld [vmem:[#allocation7 + $0x3c] sm:$0xf]
        %v944 = vld [vmem:[%s4] sm:$0x1]
        %v946 = vlaneseq
        %v947 = vshrl.u32 %v946, 7
        %v948 = vsub.s32 0, %v947
        %v949 = vrot.slane %v944, %v948
        %v967 = vunpack.c.l.b16 %v928
        %v968 = vunpack.c.l.b16 %v929
        %v969 = vunpack.c.l.b16 %v930
        %v970 = vunpack.c.l.b16 %v931
        %v971 = vunpack.c.l.b16 %v932
        %v972 = vunpack.c.l.b16 %v933
        %v973 = vunpack.c.l.b16 %v934
        %v974 = vunpack.c.l.b16 %v935
        %v975 = vunpack.c.l.b16 %v936
        %v976 = vunpack.c.l.b16 %v937
        %v977 = vunpack.c.l.b16 %v938
        %v978 = vunpack.c.l.b16 %v939
        %v979 = vunpack.c.l.b16 %v940
        %v980 = vunpack.c.l.b16 %v941
        %v981 = vunpack.c.l.b16 %v942
        %v982 = vunpack.c.l.b16 %v943
        %v983 = vpack.c.b16 %v968, %v967
        %v984 = vpack.c.b16 %v970, %v969
        %v985 = vpack.c.b16 %v972, %v971
        %v986 = vpack.c.b16 %v974, %v973
        %v987 = vpack.c.b16 %v976, %v975
        %v988 = vpack.c.b16 %v978, %v977
        %v989 = vpack.c.b16 %v980, %v979
        %v990 = vpack.c.b16 %v982, %v981
        %999 = vmatprep.subr.bf16.mxu0 0
        %1000 = vmatpush1.bf16.msra.mxu0 %v983
        %1001 = vmatprep.subr.bf16.mxu0 0
        %1002 = vmatpush1.bf16.msra.mxu0 %v984
        %1003 = vmatprep.subr.bf16.mxu0 0
        %1004 = vmatpush1.bf16.msra.mxu0 %v985
        %1005 = vmatprep.subr.bf16.mxu0 0
        %1006 = vmatpush1.bf16.msra.mxu0 %v986
        %1007 = vmatprep.subr.bf16.mxu0 0
        %1008 = vmatpush1.bf16.msra.mxu0 %v987
        %1009 = vmatprep.subr.bf16.mxu0 0
        %1010 = vmatpush1.bf16.msra.mxu0 %v988
        %1011 = vmatprep.subr.bf16.mxu0 0
        %1012 = vmatpush1.bf16.msra.mxu0 %v989
        %1013 = vmatprep.subr.bf16.mxu0 0
        %1014 = vmatpush1.bf16.msra.mxu0 %v990
        %1015 = vmatprep.subr.bf16.mxu0 0
        %1016 = vmatpush1.bf16.msra.mxu0 0
        %1017 = vmatprep.subr.bf16.mxu0 0
        %1018 = vmatpush1.bf16.msra.mxu0 0
        %1019 = vmatprep.subr.bf16.mxu0 0
        %1020 = vmatpush1.bf16.msra.mxu0 0
        %1021 = vmatprep.subr.bf16.mxu0 0
        %1022 = vmatpush1.bf16.msra.mxu0 0
        %1023 = vmatprep.subr.bf16.mxu0 0
        %1024 = vmatpush1.bf16.msra.mxu0 0
        %1025 = vmatprep.subr.bf16.mxu0 0
        %1026 = vmatpush1.bf16.msra.mxu0 0
        %1027 = vmatprep.subr.bf16.mxu0 0
        %1028 = vmatpush1.bf16.msra.mxu0 0
        %1029 = vmatprep.subr.bf16.mxu0 0
        %1030 = vmatpush1.bf16.msra.mxu0 0
        %1031 = vmatprep.mubr.bf16.mxu0 0
        %1032 = vmatmul.mubr.bf16.gmra.mrb[0].mxu0 %v912
        %v1033 = vpop.f32.mrb[0].mxu0
        %v1034 = vadd.f32 %v949, %v1033
        %v1035 = vpop.f32.mrb[0].mxu0
        %v1036 = vpop.f32.mrb[0].mxu0
        %v1037 = vadd.f32 %v949, %v1036
        %v1038 = vpop.f32.mrb[0].mxu0
        %1039 = vmatprep.mubr.bf16.mxu0 0
        %1040 = vmatmul.mubr.bf16.gmra.mrb[0].mxu0 %v913
        %v1041 = vpop.f32.mrb[0].mxu0
        %v1042 = vadd.f32 %v949, %v1041
        %v1043 = vpop.f32.mrb[0].mxu0
        %v1044 = vpop.f32.mrb[0].mxu0
        %v1045 = vadd.f32 %v949, %v1044
        %v1046 = vpop.f32.mrb[0].mxu0
        %1047 = vmatprep.mubr.bf16.mxu0 0
        %1048 = vmatmul.mubr.bf16.gmra.mrb[0].mxu0 %v914
        %v1049 = vpop.f32.mrb[0].mxu0
        %v1050 = vadd.f32 %v949, %v1049
        %v1051 = vpop.f32.mrb[0].mxu0
        %v1052 = vpop.f32.mrb[0].mxu0
        %v1053 = vadd.f32 %v949, %v1052
        %v1054 = vpop.f32.mrb[0].mxu0
        %1055 = vmatprep.mubr.bf16.mxu0 0
        %1056 = vmatmul.mubr.bf16.gmra.mrb[0].mxu0 %v915
        %v1057 = vpop.f32.mrb[0].mxu0
        %v1058 = vadd.f32 %v949, %v1057
        %v1059 = vpop.f32.mrb[0].mxu0
        %v1060 = vpop.f32.mrb[0].mxu0
        %v1061 = vadd.f32 %v949, %v1060
        %v1062 = vpop.f32.mrb[0].mxu0
        %1063 = vmatprep.mubr.bf16.mxu0 0
        %1064 = vmatmul.mubr.bf16.gmra.mrb[0].mxu0 %v916
        %v1065 = vpop.f32.mrb[0].mxu0
        %v1066 = vadd.f32 %v949, %v1065
        %v1067 = vpop.f32.mrb[0].mxu0
        %v1068 = vpop.f32.mrb[0].mxu0
        %v1069 = vadd.f32 %v949, %v1068
        %v1070 = vpop.f32.mrb[0].mxu0
        %1071 = vmatprep.mubr.bf16.mxu0 0
        %1072 = vmatmul.mubr.bf16.gmra.mrb[0].mxu0 %v917
        %v1073 = vpop.f32.mrb[0].mxu0
        %v1074 = vadd.f32 %v949, %v1073
        %v1075 = vpop.f32.mrb[0].mxu0
        %v1076 = vpop.f32.mrb[0].mxu0
        %v1077 = vadd.f32 %v949, %v1076
        %v1078 = vpop.f32.mrb[0].mxu0
        %1079 = vmatprep.mubr.bf16.mxu0 0
        %1080 = vmatmul.mubr.bf16.gmra.mrb[0].mxu0 %v918
        %v1081 = vpop.f32.mrb[0].mxu0
        %v1082 = vadd.f32 %v949, %v1081
        %v1083 = vpop.f32.mrb[0].mxu0
        %v1084 = vpop.f32.mrb[0].mxu0
        %v1085 = vadd.f32 %v949, %v1084
        %v1086 = vpop.f32.mrb[0].mxu0
        %1087 = vmatprep.mubr.bf16.mxu0 0
        %1088 = vmatmul.mubr.bf16.gmra.mrb[0].mxu0 %v919
        %v1089 = vpop.f32.mrb[0].mxu0
        %v1090 = vadd.f32 %v949, %v1089
        %v1091 = vpop.f32.mrb[0].mxu0
        %v1092 = vpop.f32.mrb[0].mxu0
        %v1093 = vadd.f32 %v949, %v1092
        %v1094 = vpop.f32.mrb[0].mxu0
        %1095 = vmatprep.mubr.bf16.mxu0 0
        %1096 = vmatmul.mubr.bf16.gmra.mrb[0].mxu0 %v920
        %v1097 = vpop.f32.mrb[0].mxu0
        %v1098 = vadd.f32 %v949, %v1097
        %v1099 = vpop.f32.mrb[0].mxu0
        %v1100 = vpop.f32.mrb[0].mxu0
        %v1101 = vadd.f32 %v949, %v1100
        %v1102 = vpop.f32.mrb[0].mxu0
        %1103 = vmatprep.mubr.bf16.mxu0 0
        %1104 = vmatmul.mubr.bf16.gmra.mrb[0].mxu0 %v921
        %v1105 = vpop.f32.mrb[0].mxu0
        %v1106 = vadd.f32 %v949, %v1105
        %v1107 = vpop.f32.mrb[0].mxu0
        %v1108 = vpop.f32.mrb[0].mxu0
        %v1109 = vadd.f32 %v949, %v1108
        %v1110 = vpop.f32.mrb[0].mxu0
        %1111 = vmatprep.mubr.bf16.mxu0 0
        %1112 = vmatmul.mubr.bf16.gmra.mrb[0].mxu0 %v922
        %v1113 = vpop.f32.mrb[0].mxu0
        %v1114 = vadd.f32 %v949, %v1113
        %v1115 = vpop.f32.mrb[0].mxu0
        %v1116 = vpop.f32.mrb[0].mxu0
        %v1117 = vadd.f32 %v949, %v1116
        %v1118 = vpop.f32.mrb[0].mxu0
        %1119 = vmatprep.mubr.bf16.mxu0 0
        %1120 = vmatmul.mubr.bf16.gmra.mrb[0].mxu0 %v923
        %v1121 = vpop.f32.mrb[0].mxu0
        %v1122 = vadd.f32 %v949, %v1121
        %v1123 = vpop.f32.mrb[0].mxu0
        %v1124 = vpop.f32.mrb[0].mxu0
        %v1125 = vadd.f32 %v949, %v1124
        %v1126 = vpop.f32.mrb[0].mxu0
        %1127 = vmatprep.mubr.bf16.mxu0 0
        %1128 = vmatmul.mubr.bf16.gmra.mrb[0].mxu0 %v924
        %v1129 = vpop.f32.mrb[0].mxu0
        %v1130 = vadd.f32 %v949, %v1129
        %v1131 = vpop.f32.mrb[0].mxu0
        %v1132 = vpop.f32.mrb[0].mxu0
        %v1133 = vadd.f32 %v949, %v1132
        %v1134 = vpop.f32.mrb[0].mxu0
        %1135 = vmatprep.mubr.bf16.mxu0 0
        %1136 = vmatmul.mubr.bf16.gmra.mrb[0].mxu0 %v925
        %v1137 = vpop.f32.mrb[0].mxu0
        %v1138 = vadd.f32 %v949, %v1137
        %v1139 = vpop.f32.mrb[0].mxu0
        %v1140 = vpop.f32.mrb[0].mxu0
        %v1141 = vadd.f32 %v949, %v1140
        %v1142 = vpop.f32.mrb[0].mxu0
        %1143 = vmatprep.mubr.bf16.mxu0 0
        %1144 = vmatmul.mubr.bf16.gmra.mrb[0].mxu0 %v926
        %v1145 = vpop.f32.mrb[0].mxu0
        %v1146 = vadd.f32 %v949, %v1145
        %v1147 = vpop.f32.mrb[0].mxu0
        %v1148 = vpop.f32.mrb[0].mxu0
        %v1149 = vadd.f32 %v949, %v1148
        %v1150 = vpop.f32.mrb[0].mxu0
        %1151 = vmatprep.mubr.bf16.mxu0 0
        %1152 = vmatmul.mubr.bf16.gmra.mrb[0].mxu0 %v927
        %v1153 = vpop.f32.mrb[0].mxu0
        %v1154 = vadd.f32 %v949, %v1153
        %v1155 = vpop.f32.mrb[0].mxu0
        %v1156 = vpop.f32.mrb[0].mxu0
        %v1157 = vadd.f32 %v949, %v1156
        %v1158 = vpop.f32.mrb[0].mxu0
        %1159 = vdwg.mxu0
        %v1160 = vmax.f32 %v1034, 0.0
        %v1161 = vmax.f32 %v1037, 0.0
        %v1162 = vmax.f32 %v1042, 0.0
        %v1163 = vmax.f32 %v1045, 0.0
        %v1164 = vmax.f32 %v1050, 0.0
        %v1165 = vmax.f32 %v1053, 0.0
        %v1166 = vmax.f32 %v1058, 0.0
        %v1167 = vmax.f32 %v1061, 0.0
        %v1168 = vmax.f32 %v1066, 0.0
        %v1169 = vmax.f32 %v1069, 0.0
        %v1170 = vmax.f32 %v1074, 0.0
        %v1171 = vmax.f32 %v1077, 0.0
        %v1172 = vmax.f32 %v1082, 0.0
        %v1173 = vmax.f32 %v1085, 0.0
        %v1174 = vmax.f32 %v1090, 0.0
        %v1175 = vmax.f32 %v1093, 0.0
        %v1176 = vmax.f32 %v1098, 0.0
        %v1177 = vmax.f32 %v1101, 0.0
        %v1178 = vmax.f32 %v1106, 0.0
        %v1179 = vmax.f32 %v1109, 0.0
        %v1180 = vmax.f32 %v1114, 0.0
        %v1181 = vmax.f32 %v1117, 0.0
        %v1182 = vmax.f32 %v1122, 0.0
        %v1183 = vmax.f32 %v1125, 0.0
        %v1184 = vmax.f32 %v1130, 0.0
        %v1185 = vmax.f32 %v1133, 0.0
        %v1186 = vmax.f32 %v1138, 0.0
        %v1187 = vmax.f32 %v1141, 0.0
        %v1188 = vmax.f32 %v1146, 0.0
        %v1189 = vmax.f32 %v1149, 0.0
        %v1190 = vmax.f32 %v1154, 0.0
        %v1191 = vmax.f32 %v1157, 0.0
        %v1192 = vpack.c.bf16 %v1161, %v1160
        %v1193 = vpack.c.bf16 %v1163, %v1162
        %v1194 = vpack.c.bf16 %v1165, %v1164
        %v1195 = vpack.c.bf16 %v1167, %v1166
        %v1196 = vpack.c.bf16 %v1169, %v1168
        %v1197 = vpack.c.bf16 %v1171, %v1170
        %v1198 = vpack.c.bf16 %v1173, %v1172
        %v1199 = vpack.c.bf16 %v1175, %v1174
        %v1200 = vpack.c.bf16 %v1177, %v1176
        %v1201 = vpack.c.bf16 %v1179, %v1178
        %v1202 = vpack.c.bf16 %v1181, %v1180
        %v1203 = vpack.c.bf16 %v1183, %v1182
        %v1204 = vpack.c.bf16 %v1185, %v1184
        %v1205 = vpack.c.bf16 %v1187, %v1186
        %v1206 = vpack.c.bf16 %v1189, %v1188
        %v1207 = vpack.c.bf16 %v1191, %v1190
        %v1208 = vld [vmem:[#allocation8] sm:$0xff]
        %v1209 = vld [vmem:[#allocation8 + $0x8] sm:$0xff]
        %v1210 = vld [vmem:[#allocation8 + $0x10] sm:$0xff]
        %v1211 = vld [vmem:[#allocation8 + $0x18] sm:$0xff]
        %v1212 = vld [vmem:[#allocation8 + $0x20] sm:$0xff]
        %v1213 = vld [vmem:[#allocation8 + $0x28] sm:$0xff]
        %v1214 = vld [vmem:[#allocation8 + $0x30] sm:$0xff]
        %v1215 = vld [vmem:[#allocation8 + $0x38] sm:$0xff]
        %v1216 = vld [vmem:[#allocation8 + $0x40] sm:$0xff]
        %v1217 = vld [vmem:[#allocation8 + $0x48] sm:$0xff]
        %v1218 = vld [vmem:[#allocation8 + $0x50] sm:$0xff]
        %v1219 = vld [vmem:[#allocation8 + $0x58] sm:$0xff]
        %v1220 = vld [vmem:[#allocation8 + $0x60] sm:$0xff]
        %v1221 = vld [vmem:[#allocation8 + $0x68] sm:$0xff]
        %v1222 = vld [vmem:[#allocation8 + $0x70] sm:$0xff]
        %v1223 = vld [vmem:[#allocation8 + $0x78] sm:$0xff]
        %v1224 = vld [vmem:[%s6] sm:$0x3]
        %v1226 = vlaneseq
        %v1227 = vshrl.u32 %v1226, 7
        %v1228 = vsub.s32 0, %v1227
        %v1229 = vrot.slane %v1224, %v1228
        %v1230 = vlaneseq
        %v1231 = vshrl.u32 %v1230, 7
        %v1232 = vsub.s32 1, %v1231
        %v1233 = vrot.slane %v1224, %v1232
        %v1252 = vunpack.c.l.b16 %v1208
        %v1253 = vunpack.c.h.b16 %v1208
        %v1254 = vunpack.c.l.b16 %v1209
        %v1255 = vunpack.c.h.b16 %v1209
        %v1256 = vunpack.c.l.b16 %v1210
        %v1257 = vunpack.c.h.b16 %v1210
        %v1258 = vunpack.c.l.b16 %v1211
        %v1259 = vunpack.c.h.b16 %v1211
        %v1260 = vunpack.c.l.b16 %v1212
        %v1261 = vunpack.c.h.b16 %v1212
        %v1262 = vunpack.c.l.b16 %v1213
        %v1263 = vunpack.c.h.b16 %v1213
        %v1264 = vunpack.c.l.b16 %v1214
        %v1265 = vunpack.c.h.b16 %v1214
        %v1266 = vunpack.c.l.b16 %v1215
        %v1267 = vunpack.c.h.b16 %v1215
        %v1268 = vunpack.c.l.b16 %v1216
        %v1269 = vunpack.c.h.b16 %v1216
        %v1270 = vunpack.c.l.b16 %v1217
        %v1271 = vunpack.c.h.b16 %v1217
        %v1272 = vunpack.c.l.b16 %v1218
        %v1273 = vunpack.c.h.b16 %v1218
        %v1274 = vunpack.c.l.b16 %v1219
        %v1275 = vunpack.c.h.b16 %v1219
        %v1276 = vunpack.c.l.b16 %v1220
        %v1277 = vunpack.c.h.b16 %v1220
        %v1278 = vunpack.c.l.b16 %v1221
        %v1279 = vunpack.c.h.b16 %v1221
        %v1280 = vunpack.c.l.b16 %v1222
        %v1281 = vunpack.c.h.b16 %v1222
        %v1282 = vunpack.c.l.b16 %v1223
        %v1283 = vunpack.c.h.b16 %v1223
        %v1284 = vpack.c.b16 %v1254, %v1252
        %v1285 = vpack.c.b16 %v1255, %v1253
        %v1286 = vpack.c.b16 %v1258, %v1256
        %v1287 = vpack.c.b16 %v1259, %v1257
        %v1288 = vpack.c.b16 %v1262, %v1260
        %v1289 = vpack.c.b16 %v1263, %v1261
        %v1290 = vpack.c.b16 %v1266, %v1264
        %v1291 = vpack.c.b16 %v1267, %v1265
        %v1292 = vpack.c.b16 %v1270, %v1268
        %v1293 = vpack.c.b16 %v1271, %v1269
        %v1294 = vpack.c.b16 %v1274, %v1272
        %v1295 = vpack.c.b16 %v1275, %v1273
        %v1296 = vpack.c.b16 %v1278, %v1276
        %v1297 = vpack.c.b16 %v1279, %v1277
        %v1298 = vpack.c.b16 %v1282, %v1280
        %v1299 = vpack.c.b16 %v1283, %v1281
        %1316 = vmatprep.subr.bf16.mxu0 %v1285
        %1317 = vmatpush1.bf16.msra.mxu0 %v1284
        %1318 = vmatprep.subr.bf16.mxu0 %v1287
        %1319 = vmatpush1.bf16.msra.mxu0 %v1286
        %1320 = vmatprep.subr.bf16.mxu0 %v1289
        %1321 = vmatpush1.bf16.msra.mxu0 %v1288
        %1322 = vmatprep.subr.bf16.mxu0 %v1291
        %1323 = vmatpush1.bf16.msra.mxu0 %v1290
        %1324 = vmatprep.subr.bf16.mxu0 %v1293
        %1325 = vmatpush1.bf16.msra.mxu0 %v1292
        %1326 = vmatprep.subr.bf16.mxu0 %v1295
        %1327 = vmatpush1.bf16.msra.mxu0 %v1294
        %1328 = vmatprep.subr.bf16.mxu0 %v1297
        %1329 = vmatpush1.bf16.msra.mxu0 %v1296
        %1330 = vmatprep.subr.bf16.mxu0 %v1299
        %1331 = vmatpush1.bf16.msra.mxu0 %v1298
        %1332 = vmatprep.subr.bf16.mxu0 0
        %1333 = vmatpush1.bf16.msra.mxu0 0
        %1334 = vmatprep.subr.bf16.mxu0 0
        %1335 = vmatpush1.bf16.msra.mxu0 0
        %1336 = vmatprep.subr.bf16.mxu0 0
        %1337 = vmatpush1.bf16.msra.mxu0 0
        %1338 = vmatprep.subr.bf16.mxu0 0
        %1339 = vmatpush1.bf16.msra.mxu0 0
        %1340 = vmatprep.subr.bf16.mxu0 0
        %1341 = vmatpush1.bf16.msra.mxu0 0
        %1342 = vmatprep.subr.bf16.mxu0 0
        %1343 = vmatpush1.bf16.msra.mxu0 0
        %1344 = vmatprep.subr.bf16.mxu0 0
        %1345 = vmatpush1.bf16.msra.mxu0 0
        %1346 = vmatprep.subr.bf16.mxu0 0
        %1347 = vmatpush1.bf16.msra.mxu0 0
        %1348 = vmatprep.mubr.bf16.mxu0 0
        %1349 = vmatmul.mubr.bf16.gmra.mrb[0].mxu0 %v1192
        %v1350 = vpop.f32.mrb[0].mxu0
        %v1351 = vadd.f32 %v1229, %v1350
        %v1352 = vpop.f32.mrb[0].mxu0
        %v1353 = vadd.f32 %v1233, %v1352
        %v1354 = vpop.f32.mrb[0].mxu0
        %v1355 = vadd.f32 %v1229, %v1354
        %v1356 = vpop.f32.mrb[0].mxu0
        %v1357 = vadd.f32 %v1233, %v1356
        %1358 = vmatprep.mubr.bf16.mxu0 0
        %1359 = vmatmul.mubr.bf16.gmra.mrb[0].mxu0 %v1193
        %v1360 = vpop.f32.mrb[0].mxu0
        %v1361 = vadd.f32 %v1229, %v1360
        %v1362 = vpop.f32.mrb[0].mxu0
        %v1363 = vadd.f32 %v1233, %v1362
        %v1364 = vpop.f32.mrb[0].mxu0
        %v1365 = vadd.f32 %v1229, %v1364
        %v1366 = vpop.f32.mrb[0].mxu0
        %v1367 = vadd.f32 %v1233, %v1366
        %1368 = vmatprep.mubr.bf16.mxu0 0
        %1369 = vmatmul.mubr.bf16.gmra.mrb[0].mxu0 %v1194
        %v1370 = vpop.f32.mrb[0].mxu0
        %v1371 = vadd.f32 %v1229, %v1370
        %v1372 = vpop.f32.mrb[0].mxu0
        %v1373 = vadd.f32 %v1233, %v1372
        %v1374 = vpop.f32.mrb[0].mxu0
        %v1375 = vadd.f32 %v1229, %v1374
        %v1376 = vpop.f32.mrb[0].mxu0
        %v1377 = vadd.f32 %v1233, %v1376
        %1378 = vmatprep.mubr.bf16.mxu0 0
        %1379 = vmatmul.mubr.bf16.gmra.mrb[0].mxu0 %v1195
        %v1380 = vpop.f32.mrb[0].mxu0
        %v1381 = vadd.f32 %v1229, %v1380
        %v1382 = vpop.f32.mrb[0].mxu0
        %v1383 = vadd.f32 %v1233, %v1382
        %v1384 = vpop.f32.mrb[0].mxu0
        %v1385 = vadd.f32 %v1229, %v1384
        %v1386 = vpop.f32.mrb[0].mxu0
        %v1387 = vadd.f32 %v1233, %v1386
        %1388 = vmatprep.mubr.bf16.mxu0 0
        %1389 = vmatmul.mubr.bf16.gmra.mrb[0].mxu0 %v1196
        %v1390 = vpop.f32.mrb[0].mxu0
        %v1391 = vadd.f32 %v1229, %v1390
        %v1392 = vpop.f32.mrb[0].mxu0
        %v1393 = vadd.f32 %v1233, %v1392
        %v1394 = vpop.f32.mrb[0].mxu0
        %v1395 = vadd.f32 %v1229, %v1394
        %v1396 = vpop.f32.mrb[0].mxu0
        %v1397 = vadd.f32 %v1233, %v1396
        %1398 = vmatprep.mubr.bf16.mxu0 0
        %1399 = vmatmul.mubr.bf16.gmra.mrb[0].mxu0 %v1197
        %v1400 = vpop.f32.mrb[0].mxu0
        %v1401 = vadd.f32 %v1229, %v1400
        %v1402 = vpop.f32.mrb[0].mxu0
        %v1403 = vadd.f32 %v1233, %v1402
        %v1404 = vpop.f32.mrb[0].mxu0
        %v1405 = vadd.f32 %v1229, %v1404
        %v1406 = vpop.f32.mrb[0].mxu0
        %v1407 = vadd.f32 %v1233, %v1406
        %1408 = vmatprep.mubr.bf16.mxu0 0
        %1409 = vmatmul.mubr.bf16.gmra.mrb[0].mxu0 %v1198
        %v1410 = vpop.f32.mrb[0].mxu0
        %v1411 = vadd.f32 %v1229, %v1410
        %v1412 = vpop.f32.mrb[0].mxu0
        %v1413 = vadd.f32 %v1233, %v1412
        %v1414 = vpop.f32.mrb[0].mxu0
        %v1415 = vadd.f32 %v1229, %v1414
        %v1416 = vpop.f32.mrb[0].mxu0
        %v1417 = vadd.f32 %v1233, %v1416
        %1418 = vmatprep.mubr.bf16.mxu0 0
        %1419 = vmatmul.mubr.bf16.gmra.mrb[0].mxu0 %v1199
        %v1420 = vpop.f32.mrb[0].mxu0
        %v1421 = vadd.f32 %v1229, %v1420
        %v1422 = vpop.f32.mrb[0].mxu0
        %v1423 = vadd.f32 %v1233, %v1422
        %v1424 = vpop.f32.mrb[0].mxu0
        %v1425 = vadd.f32 %v1229, %v1424
        %v1426 = vpop.f32.mrb[0].mxu0
        %v1427 = vadd.f32 %v1233, %v1426
        %1428 = vmatprep.mubr.bf16.mxu0 0
        %1429 = vmatmul.mubr.bf16.gmra.mrb[0].mxu0 %v1200
        %v1430 = vpop.f32.mrb[0].mxu0
        %v1431 = vadd.f32 %v1229, %v1430
        %v1432 = vpop.f32.mrb[0].mxu0
        %v1433 = vadd.f32 %v1233, %v1432
        %v1434 = vpop.f32.mrb[0].mxu0
        %v1435 = vadd.f32 %v1229, %v1434
        %v1436 = vpop.f32.mrb[0].mxu0
        %v1437 = vadd.f32 %v1233, %v1436
        %1438 = vmatprep.mubr.bf16.mxu0 0
        %1439 = vmatmul.mubr.bf16.gmra.mrb[0].mxu0 %v1201
        %v1440 = vpop.f32.mrb[0].mxu0
        %v1441 = vadd.f32 %v1229, %v1440
        %v1442 = vpop.f32.mrb[0].mxu0
        %v1443 = vadd.f32 %v1233, %v1442
        %v1444 = vpop.f32.mrb[0].mxu0
        %v1445 = vadd.f32 %v1229, %v1444
        %v1446 = vpop.f32.mrb[0].mxu0
        %v1447 = vadd.f32 %v1233, %v1446
        %1448 = vmatprep.mubr.bf16.mxu0 0
        %1449 = vmatmul.mubr.bf16.gmra.mrb[0].mxu0 %v1202
        %v1450 = vpop.f32.mrb[0].mxu0
        %v1451 = vadd.f32 %v1229, %v1450
        %v1452 = vpop.f32.mrb[0].mxu0
        %v1453 = vadd.f32 %v1233, %v1452
        %v1454 = vpop.f32.mrb[0].mxu0
        %v1455 = vadd.f32 %v1229, %v1454
        %v1456 = vpop.f32.mrb[0].mxu0
        %v1457 = vadd.f32 %v1233, %v1456
        %1458 = vmatprep.mubr.bf16.mxu0 0
        %1459 = vmatmul.mubr.bf16.gmra.mrb[0].mxu0 %v1203
        %v1460 = vpop.f32.mrb[0].mxu0
        %v1461 = vadd.f32 %v1229, %v1460
        %v1462 = vpop.f32.mrb[0].mxu0
        %v1463 = vadd.f32 %v1233, %v1462
        %v1464 = vpop.f32.mrb[0].mxu0
        %v1465 = vadd.f32 %v1229, %v1464
        %v1466 = vpop.f32.mrb[0].mxu0
        %v1467 = vadd.f32 %v1233, %v1466
        %1468 = vmatprep.mubr.bf16.mxu0 0
        %1469 = vmatmul.mubr.bf16.gmra.mrb[0].mxu0 %v1204
        %v1470 = vpop.f32.mrb[0].mxu0
        %v1471 = vadd.f32 %v1229, %v1470
        %v1472 = vpop.f32.mrb[0].mxu0
        %v1473 = vadd.f32 %v1233, %v1472
        %v1474 = vpop.f32.mrb[0].mxu0
        %v1475 = vadd.f32 %v1229, %v1474
        %v1476 = vpop.f32.mrb[0].mxu0
        %v1477 = vadd.f32 %v1233, %v1476
        %1478 = vmatprep.mubr.bf16.mxu0 0
        %1479 = vmatmul.mubr.bf16.gmra.mrb[0].mxu0 %v1205
        %v1480 = vpop.f32.mrb[0].mxu0
        %v1481 = vadd.f32 %v1229, %v1480
        %v1482 = vpop.f32.mrb[0].mxu0
        %v1483 = vadd.f32 %v1233, %v1482
        %v1484 = vpop.f32.mrb[0].mxu0
        %v1485 = vadd.f32 %v1229, %v1484
        %v1486 = vpop.f32.mrb[0].mxu0
        %v1487 = vadd.f32 %v1233, %v1486
        %1488 = vmatprep.mubr.bf16.mxu0 0
        %1489 = vmatmul.mubr.bf16.gmra.mrb[0].mxu0 %v1206
        %v1490 = vpop.f32.mrb[0].mxu0
        %v1491 = vadd.f32 %v1229, %v1490
        %v1492 = vpop.f32.mrb[0].mxu0
        %v1493 = vadd.f32 %v1233, %v1492
        %v1494 = vpop.f32.mrb[0].mxu0
        %v1495 = vadd.f32 %v1229, %v1494
        %v1496 = vpop.f32.mrb[0].mxu0
        %v1497 = vadd.f32 %v1233, %v1496
        %1498 = vmatprep.mubr.bf16.mxu0 0
        %1499 = vmatmul.mubr.bf16.gmra.mrb[0].mxu0 %v1207
        %v1500 = vpop.f32.mrb[0].mxu0
        %v1501 = vadd.f32 %v1229, %v1500
        %v1502 = vpop.f32.mrb[0].mxu0
        %v1503 = vadd.f32 %v1233, %v1502
        %v1504 = vpop.f32.mrb[0].mxu0
        %v1505 = vadd.f32 %v1229, %v1504
        %v1506 = vpop.f32.mrb[0].mxu0
        %v1507 = vadd.f32 %v1233, %v1506
        %1508 = vdwg.mxu0
        %v1509 = vmax.f32 %v1351, 0.0
        %v1510 = vmax.f32 %v1353, 0.0
        %v1511 = vmax.f32 %v1355, 0.0
        %v1512 = vmax.f32 %v1357, 0.0
        %v1513 = vmax.f32 %v1361, 0.0
        %v1514 = vmax.f32 %v1363, 0.0
        %v1515 = vmax.f32 %v1365, 0.0
        %v1516 = vmax.f32 %v1367, 0.0
        %v1517 = vmax.f32 %v1371, 0.0
        %v1518 = vmax.f32 %v1373, 0.0
        %v1519 = vmax.f32 %v1375, 0.0
        %v1520 = vmax.f32 %v1377, 0.0
        %v1521 = vmax.f32 %v1381, 0.0
        %v1522 = vmax.f32 %v1383, 0.0
        %v1523 = vmax.f32 %v1385, 0.0
        %v1524 = vmax.f32 %v1387, 0.0
        %v1525 = vmax.f32 %v1391, 0.0
        %v1526 = vmax.f32 %v1393, 0.0
        %v1527 = vmax.f32 %v1395, 0.0
        %v1528 = vmax.f32 %v1397, 0.0
        %v1529 = vmax.f32 %v1401, 0.0
        %v1530 = vmax.f32 %v1403, 0.0
        %v1531 = vmax.f32 %v1405, 0.0
        %v1532 = vmax.f32 %v1407, 0.0
        %v1533 = vmax.f32 %v1411, 0.0
        %v1534 = vmax.f32 %v1413, 0.0
        %v1535 = vmax.f32 %v1415, 0.0
        %v1536 = vmax.f32 %v1417, 0.0
        %v1537 = vmax.f32 %v1421, 0.0
        %v1538 = vmax.f32 %v1423, 0.0
        %v1539 = vmax.f32 %v1425, 0.0
        %v1540 = vmax.f32 %v1427, 0.0
        %v1541 = vmax.f32 %v1431, 0.0
        %v1542 = vmax.f32 %v1433, 0.0
        %v1543 = vmax.f32 %v1435, 0.0
        %v1544 = vmax.f32 %v1437, 0.0
        %v1545 = vmax.f32 %v1441, 0.0
        %v1546 = vmax.f32 %v1443, 0.0
        %v1547 = vmax.f32 %v1445, 0.0
        %v1548 = vmax.f32 %v1447, 0.0
        %v1549 = vmax.f32 %v1451, 0.0
        %v1550 = vmax.f32 %v1453, 0.0
        %v1551 = vmax.f32 %v1455, 0.0
        %v1552 = vmax.f32 %v1457, 0.0
        %v1553 = vmax.f32 %v1461, 0.0
        %v1554 = vmax.f32 %v1463, 0.0
        %v1555 = vmax.f32 %v1465, 0.0
        %v1556 = vmax.f32 %v1467, 0.0
        %v1557 = vmax.f32 %v1471, 0.0
        %v1558 = vmax.f32 %v1473, 0.0
        %v1559 = vmax.f32 %v1475, 0.0
        %v1560 = vmax.f32 %v1477, 0.0
        %v1561 = vmax.f32 %v1481, 0.0
        %v1562 = vmax.f32 %v1483, 0.0
        %v1563 = vmax.f32 %v1485, 0.0
        %v1564 = vmax.f32 %v1487, 0.0
        %v1565 = vmax.f32 %v1491, 0.0
        %v1566 = vmax.f32 %v1493, 0.0
        %v1567 = vmax.f32 %v1495, 0.0
        %v1568 = vmax.f32 %v1497, 0.0
        %v1569 = vmax.f32 %v1501, 0.0
        %v1570 = vmax.f32 %v1503, 0.0
        %v1571 = vmax.f32 %v1505, 0.0
        %v1572 = vmax.f32 %v1507, 0.0
        %v1573 = vpack.c.bf16 %v1511, %v1509
        %v1574 = vpack.c.bf16 %v1512, %v1510
        %v1575 = vpack.c.bf16 %v1515, %v1513
        %v1576 = vpack.c.bf16 %v1516, %v1514
        %v1577 = vpack.c.bf16 %v1519, %v1517
        %v1578 = vpack.c.bf16 %v1520, %v1518
        %v1579 = vpack.c.bf16 %v1523, %v1521
        %v1580 = vpack.c.bf16 %v1524, %v1522
        %v1581 = vpack.c.bf16 %v1527, %v1525
        %v1582 = vpack.c.bf16 %v1528, %v1526
        %v1583 = vpack.c.bf16 %v1531, %v1529
        %v1584 = vpack.c.bf16 %v1532, %v1530
        %v1585 = vpack.c.bf16 %v1535, %v1533
        %v1586 = vpack.c.bf16 %v1536, %v1534
        %v1587 = vpack.c.bf16 %v1539, %v1537
        %v1588 = vpack.c.bf16 %v1540, %v1538
        %v1589 = vpack.c.bf16 %v1543, %v1541
        %v1590 = vpack.c.bf16 %v1544, %v1542
        %v1591 = vpack.c.bf16 %v1547, %v1545
        %v1592 = vpack.c.bf16 %v1548, %v1546
        %v1593 = vpack.c.bf16 %v1551, %v1549
        %v1594 = vpack.c.bf16 %v1552, %v1550
        %v1595 = vpack.c.bf16 %v1555, %v1553
        %v1596 = vpack.c.bf16 %v1556, %v1554
        %v1597 = vpack.c.bf16 %v1559, %v1557
        %v1598 = vpack.c.bf16 %v1560, %v1558
        %v1599 = vpack.c.bf16 %v1563, %v1561
        %v1600 = vpack.c.bf16 %v1564, %v1562
        %v1601 = vpack.c.bf16 %v1567, %v1565
        %v1602 = vpack.c.bf16 %v1568, %v1566
        %v1603 = vpack.c.bf16 %v1571, %v1569
        %v1604 = vpack.c.bf16 %v1572, %v1570
        %v1605 = vld [vmem:[#allocation10] sm:$0xf]
        %v1606 = vld [vmem:[#allocation10 + $0x4] sm:$0xf]
        %v1607 = vld [vmem:[#allocation10 + $0x8] sm:$0xf]
        %v1608 = vld [vmem:[#allocation10 + $0xc] sm:$0xf]
        %v1609 = vld [vmem:[#allocation10 + $0x10] sm:$0xf]
        %v1610 = vld [vmem:[#allocation10 + $0x14] sm:$0xf]
        %v1611 = vld [vmem:[#allocation10 + $0x18] sm:$0xf]
        %v1612 = vld [vmem:[#allocation10 + $0x1c] sm:$0xf]
        %v1613 = vld [vmem:[#allocation10 + $0x20] sm:$0xf]
        %v1614 = vld [vmem:[#allocation10 + $0x24] sm:$0xf]
        %v1615 = vld [vmem:[#allocation10 + $0x28] sm:$0xf]
        %v1616 = vld [vmem:[#allocation10 + $0x2c] sm:$0xf]
        %v1617 = vld [vmem:[#allocation10 + $0x30] sm:$0xf]
        %v1618 = vld [vmem:[#allocation10 + $0x34] sm:$0xf]
        %v1619 = vld [vmem:[#allocation10 + $0x38] sm:$0xf]
        %v1620 = vld [vmem:[#allocation10 + $0x3c] sm:$0xf]
        %v1621 = vld [vmem:[#allocation10 + $0x40] sm:$0xf]
        %v1622 = vld [vmem:[#allocation10 + $0x44] sm:$0xf]
        %v1623 = vld [vmem:[#allocation10 + $0x48] sm:$0xf]
        %v1624 = vld [vmem:[#allocation10 + $0x4c] sm:$0xf]
        %v1625 = vld [vmem:[#allocation10 + $0x50] sm:$0xf]
        %v1626 = vld [vmem:[#allocation10 + $0x54] sm:$0xf]
        %v1627 = vld [vmem:[#allocation10 + $0x58] sm:$0xf]
        %v1628 = vld [vmem:[#allocation10 + $0x5c] sm:$0xf]
        %v1629 = vld [vmem:[#allocation10 + $0x60] sm:$0xf]
        %v1630 = vld [vmem:[#allocation10 + $0x64] sm:$0xf]
        %v1631 = vld [vmem:[#allocation10 + $0x68] sm:$0xf]
        %v1632 = vld [vmem:[#allocation10 + $0x6c] sm:$0xf]
        %v1633 = vld [vmem:[#allocation10 + $0x70] sm:$0xf]
        %v1634 = vld [vmem:[#allocation10 + $0x74] sm:$0xf]
        %v1635 = vld [vmem:[#allocation10 + $0x78] sm:$0xf]
        %v1636 = vld [vmem:[#allocation10 + $0x7c] sm:$0xf]
        %v1637 = vld [vmem:[%s8] sm:$0x1]
        %v1639 = vlaneseq
        %v1640 = vshrl.u32 %v1639, 7
        %v1641 = vsub.s32 0, %v1640
        %v1642 = vrot.slane %v1637, %v1641
        %v1676 = vunpack.c.l.b16 %v1605
        %v1677 = vunpack.c.l.b16 %v1606
        %v1678 = vunpack.c.l.b16 %v1607
        %v1679 = vunpack.c.l.b16 %v1608
        %v1680 = vunpack.c.l.b16 %v1609
        %v1681 = vunpack.c.l.b16 %v1610
        %v1682 = vunpack.c.l.b16 %v1611
        %v1683 = vunpack.c.l.b16 %v1612
        %v1684 = vunpack.c.l.b16 %v1613
        %v1685 = vunpack.c.l.b16 %v1614
        %v1686 = vunpack.c.l.b16 %v1615
        %v1687 = vunpack.c.l.b16 %v1616
        %v1688 = vunpack.c.l.b16 %v1617
        %v1689 = vunpack.c.l.b16 %v1618
        %v1690 = vunpack.c.l.b16 %v1619
        %v1691 = vunpack.c.l.b16 %v1620
        %v1692 = vunpack.c.l.b16 %v1621
        %v1693 = vunpack.c.l.b16 %v1622
        %v1694 = vunpack.c.l.b16 %v1623
        %v1695 = vunpack.c.l.b16 %v1624
        %v1696 = vunpack.c.l.b16 %v1625
        %v1697 = vunpack.c.l.b16 %v1626
        %v1698 = vunpack.c.l.b16 %v1627
        %v1699 = vunpack.c.l.b16 %v1628
        %v1700 = vunpack.c.l.b16 %v1629
        %v1701 = vunpack.c.l.b16 %v1630
        %v1702 = vunpack.c.l.b16 %v1631
        %v1703 = vunpack.c.l.b16 %v1632
        %v1704 = vunpack.c.l.b16 %v1633
        %v1705 = vunpack.c.l.b16 %v1634
        %v1706 = vunpack.c.l.b16 %v1635
        %v1707 = vunpack.c.l.b16 %v1636
        %v1708 = vpack.c.b16 %v1677, %v1676
        %v1709 = vpack.c.b16 %v1679, %v1678
        %v1710 = vpack.c.b16 %v1681, %v1680
        %v1711 = vpack.c.b16 %v1683, %v1682
        %v1712 = vpack.c.b16 %v1685, %v1684
        %v1713 = vpack.c.b16 %v1687, %v1686
        %v1714 = vpack.c.b16 %v1689, %v1688
        %v1715 = vpack.c.b16 %v1691, %v1690
        %v1716 = vpack.c.b16 %v1693, %v1692
        %v1717 = vpack.c.b16 %v1695, %v1694
        %v1718 = vpack.c.b16 %v1697, %v1696
        %v1719 = vpack.c.b16 %v1699, %v1698
        %v1720 = vpack.c.b16 %v1701, %v1700
        %v1721 = vpack.c.b16 %v1703, %v1702
        %v1722 = vpack.c.b16 %v1705, %v1704
        %v1723 = vpack.c.b16 %v1707, %v1706
        %1740 = vmatprep.subr.bf16.mxu0 0
        %1741 = vmatpush1.bf16.msra.mxu0 %v1708
        %1742 = vmatprep.subr.bf16.mxu0 0
        %1743 = vmatpush1.bf16.msra.mxu0 %v1709
        %1744 = vmatprep.subr.bf16.mxu0 0
        %1745 = vmatpush1.bf16.msra.mxu0 %v1710
        %1746 = vmatprep.subr.bf16.mxu0 0
        %1747 = vmatpush1.bf16.msra.mxu0 %v1711
        %1748 = vmatprep.subr.bf16.mxu0 0
        %1749 = vmatpush1.bf16.msra.mxu0 %v1712
        %1750 = vmatprep.subr.bf16.mxu0 0
        %1751 = vmatpush1.bf16.msra.mxu0 %v1713
        %1752 = vmatprep.subr.bf16.mxu0 0
        %1753 = vmatpush1.bf16.msra.mxu0 %v1714
        %1754 = vmatprep.subr.bf16.mxu0 0
        %1755 = vmatpush1.bf16.msra.mxu0 %v1715
        %1756 = vmatprep.subr.bf16.mxu0 0
        %1757 = vmatpush1.bf16.msra.mxu0 %v1716
        %1758 = vmatprep.subr.bf16.mxu0 0
        %1759 = vmatpush1.bf16.msra.mxu0 %v1717
        %1760 = vmatprep.subr.bf16.mxu0 0
        %1761 = vmatpush1.bf16.msra.mxu0 %v1718
        %1762 = vmatprep.subr.bf16.mxu0 0
        %1763 = vmatpush1.bf16.msra.mxu0 %v1719
        %1764 = vmatprep.subr.bf16.mxu0 0
        %1765 = vmatpush1.bf16.msra.mxu0 %v1720
        %1766 = vmatprep.subr.bf16.mxu0 0
        %1767 = vmatpush1.bf16.msra.mxu0 %v1721
        %1768 = vmatprep.subr.bf16.mxu0 0
        %1769 = vmatpush1.bf16.msra.mxu0 %v1722
        %1770 = vmatprep.subr.bf16.mxu0 0
        %1771 = vmatpush1.bf16.msra.mxu0 %v1723
        %1772 = vmatprep.mubr.bf16.mxu0 %v1574
        %1773 = vmatmul.mubr.bf16.gmra.mrb[0].mxu0 %v1573
        %v1774 = vpop.f32.mrb[0].mxu0
        %v1775 = vadd.f32 %v1642, %v1774
        %v1776 = vpop.f32.mrb[0].mxu0
        %v1777 = vpop.f32.mrb[0].mxu0
        %v1778 = vadd.f32 %v1642, %v1777
        %v1779 = vpop.f32.mrb[0].mxu0
        %1780 = vmatprep.mubr.bf16.mxu0 %v1576
        %1781 = vmatmul.mubr.bf16.gmra.mrb[0].mxu0 %v1575
        %v1782 = vpop.f32.mrb[0].mxu0
        %v1783 = vadd.f32 %v1642, %v1782
        %v1784 = vpop.f32.mrb[0].mxu0
        %v1785 = vpop.f32.mrb[0].mxu0
        %v1786 = vadd.f32 %v1642, %v1785
        %v1787 = vpop.f32.mrb[0].mxu0
        %1788 = vmatprep.mubr.bf16.mxu0 %v1578
        %1789 = vmatmul.mubr.bf16.gmra.mrb[0].mxu0 %v1577
        %v1790 = vpop.f32.mrb[0].mxu0
        %v1791 = vadd.f32 %v1642, %v1790
        %v1792 = vpop.f32.mrb[0].mxu0
        %v1793 = vpop.f32.mrb[0].mxu0
        %v1794 = vadd.f32 %v1642, %v1793
        %v1795 = vpop.f32.mrb[0].mxu0
        %1796 = vmatprep.mubr.bf16.mxu0 %v1580
        %1797 = vmatmul.mubr.bf16.gmra.mrb[0].mxu0 %v1579
        %v1798 = vpop.f32.mrb[0].mxu0
        %v1799 = vadd.f32 %v1642, %v1798
        %v1800 = vpop.f32.mrb[0].mxu0
        %v1801 = vpop.f32.mrb[0].mxu0
        %v1802 = vadd.f32 %v1642, %v1801
        %v1803 = vpop.f32.mrb[0].mxu0
        %1804 = vmatprep.mubr.bf16.mxu0 %v1582
        %1805 = vmatmul.mubr.bf16.gmra.mrb[0].mxu0 %v1581
        %v1806 = vpop.f32.mrb[0].mxu0
        %v1807 = vadd.f32 %v1642, %v1806
        %v1808 = vpop.f32.mrb[0].mxu0
        %v1809 = vpop.f32.mrb[0].mxu0
        %v1810 = vadd.f32 %v1642, %v1809
        %v1811 = vpop.f32.mrb[0].mxu0
        %1812 = vmatprep.mubr.bf16.mxu0 %v1584
        %1813 = vmatmul.mubr.bf16.gmra.mrb[0].mxu0 %v1583
        %v1814 = vpop.f32.mrb[0].mxu0
        %v1815 = vadd.f32 %v1642, %v1814
        %v1816 = vpop.f32.mrb[0].mxu0
        %v1817 = vpop.f32.mrb[0].mxu0
        %v1818 = vadd.f32 %v1642, %v1817
        %v1819 = vpop.f32.mrb[0].mxu0
        %1820 = vmatprep.mubr.bf16.mxu0 %v1586
        %1821 = vmatmul.mubr.bf16.gmra.mrb[0].mxu0 %v1585
        %v1822 = vpop.f32.mrb[0].mxu0
        %v1823 = vadd.f32 %v1642, %v1822
        %v1824 = vpop.f32.mrb[0].mxu0
        %v1825 = vpop.f32.mrb[0].mxu0
        %v1826 = vadd.f32 %v1642, %v1825
        %v1827 = vpop.f32.mrb[0].mxu0
        %1828 = vmatprep.mubr.bf16.mxu0 %v1588
        %1829 = vmatmul.mubr.bf16.gmra.mrb[0].mxu0 %v1587
        %v1830 = vpop.f32.mrb[0].mxu0
        %v1831 = vadd.f32 %v1642, %v1830
        %v1832 = vpop.f32.mrb[0].mxu0
        %v1833 = vpop.f32.mrb[0].mxu0
        %v1834 = vadd.f32 %v1642, %v1833
        %v1835 = vpop.f32.mrb[0].mxu0
        %1836 = vmatprep.mubr.bf16.mxu0 %v1590
        %1837 = vmatmul.mubr.bf16.gmra.mrb[0].mxu0 %v1589
        %v1838 = vpop.f32.mrb[0].mxu0
        %v1839 = vadd.f32 %v1642, %v1838
        %v1840 = vpop.f32.mrb[0].mxu0
        %v1841 = vpop.f32.mrb[0].mxu0
        %v1842 = vadd.f32 %v1642, %v1841
        %v1843 = vpop.f32.mrb[0].mxu0
        %1844 = vmatprep.mubr.bf16.mxu0 %v1592
        %1845 = vmatmul.mubr.bf16.gmra.mrb[0].mxu0 %v1591
        %v1846 = vpop.f32.mrb[0].mxu0
        %v1847 = vadd.f32 %v1642, %v1846
        %v1848 = vpop.f32.mrb[0].mxu0
        %v1849 = vpop.f32.mrb[0].mxu0
        %v1850 = vadd.f32 %v1642, %v1849
        %v1851 = vpop.f32.mrb[0].mxu0
        %1852 = vmatprep.mubr.bf16.mxu0 %v1594
        %1853 = vmatmul.mubr.bf16.gmra.mrb[0].mxu0 %v1593
        %v1854 = vpop.f32.mrb[0].mxu0
        %v1855 = vadd.f32 %v1642, %v1854
        %v1856 = vpop.f32.mrb[0].mxu0
        %v1857 = vpop.f32.mrb[0].mxu0
        %v1858 = vadd.f32 %v1642, %v1857
        %v1859 = vpop.f32.mrb[0].mxu0
        %1860 = vmatprep.mubr.bf16.mxu0 %v1596
        %1861 = vmatmul.mubr.bf16.gmra.mrb[0].mxu0 %v1595
        %v1862 = vpop.f32.mrb[0].mxu0
        %v1863 = vadd.f32 %v1642, %v1862
        %v1864 = vpop.f32.mrb[0].mxu0
        %v1865 = vpop.f32.mrb[0].mxu0
        %v1866 = vadd.f32 %v1642, %v1865
        %v1867 = vpop.f32.mrb[0].mxu0
        %1868 = vmatprep.mubr.bf16.mxu0 %v1598
        %1869 = vmatmul.mubr.bf16.gmra.mrb[0].mxu0 %v1597
        %v1870 = vpop.f32.mrb[0].mxu0
        %v1871 = vadd.f32 %v1642, %v1870
        %v1872 = vpop.f32.mrb[0].mxu0
        %v1873 = vpop.f32.mrb[0].mxu0
        %v1874 = vadd.f32 %v1642, %v1873
        %v1875 = vpop.f32.mrb[0].mxu0
        %1876 = vmatprep.mubr.bf16.mxu0 %v1600
        %1877 = vmatmul.mubr.bf16.gmra.mrb[0].mxu0 %v1599
        %v1878 = vpop.f32.mrb[0].mxu0
        %v1879 = vadd.f32 %v1642, %v1878
        %v1880 = vpop.f32.mrb[0].mxu0
        %v1881 = vpop.f32.mrb[0].mxu0
        %v1882 = vadd.f32 %v1642, %v1881
        %v1883 = vpop.f32.mrb[0].mxu0
        %1884 = vmatprep.mubr.bf16.mxu0 %v1602
        %1885 = vmatmul.mubr.bf16.gmra.mrb[0].mxu0 %v1601
        %v1886 = vpop.f32.mrb[0].mxu0
        %v1887 = vadd.f32 %v1642, %v1886
        %v1888 = vpop.f32.mrb[0].mxu0
        %v1889 = vpop.f32.mrb[0].mxu0
        %v1890 = vadd.f32 %v1642, %v1889
        %v1891 = vpop.f32.mrb[0].mxu0
        %1892 = vmatprep.mubr.bf16.mxu0 %v1604
        %1893 = vmatmul.mubr.bf16.gmra.mrb[0].mxu0 %v1603
        %v1894 = vpop.f32.mrb[0].mxu0
        %v1895 = vadd.f32 %v1642, %v1894
        %v1896 = vpop.f32.mrb[0].mxu0
        %v1897 = vpop.f32.mrb[0].mxu0
        %v1898 = vadd.f32 %v1642, %v1897
        %v1899 = vpop.f32.mrb[0].mxu0
        %1900 = vdwg.mxu0
        %1901 = vst [vmem:[%s515] sm:$0xff] %v1775
        %1902 = vst [vmem:[%s515 + $0x8] sm:$0xff] %v1778
        %1903 = vst [vmem:[%s515 + $0x10] sm:$0xff] %v1783
        %1904 = vst [vmem:[%s515 + $0x18] sm:$0xff] %v1786
        %1905 = vst [vmem:[%s515 + $0x20] sm:$0xff] %v1791
        %1906 = vst [vmem:[%s515 + $0x28] sm:$0xff] %v1794
        %1907 = vst [vmem:[%s515 + $0x30] sm:$0xff] %v1799
        %1908 = vst [vmem:[%s515 + $0x38] sm:$0xff] %v1802
        %1909 = vst [vmem:[%s515 + $0x40] sm:$0xff] %v1807
        %1910 = vst [vmem:[%s515 + $0x48] sm:$0xff] %v1810
        %1911 = vst [vmem:[%s515 + $0x50] sm:$0xff] %v1815
        %1912 = vst [vmem:[%s515 + $0x58] sm:$0xff] %v1818
        %1913 = vst [vmem:[%s515 + $0x60] sm:$0xff] %v1823
        %1914 = vst [vmem:[%s515 + $0x68] sm:$0xff] %v1826
        %1915 = vst [vmem:[%s515 + $0x70] sm:$0xff] %v1831
        %1916 = vst [vmem:[%s515 + $0x78] sm:$0xff] %v1834
        %1917 = vst [vmem:[%s515 + $0x80] sm:$0xff] %v1839
        %1918 = vst [vmem:[%s515 + $0x88] sm:$0xff] %v1842
        %1919 = vst [vmem:[%s515 + $0x90] sm:$0xff] %v1847
        %1920 = vst [vmem:[%s515 + $0x98] sm:$0xff] %v1850
        %1921 = vst [vmem:[%s515 + $0xa0] sm:$0xff] %v1855
        %1922 = vst [vmem:[%s515 + $0xa8] sm:$0xff] %v1858
        %1923 = vst [vmem:[%s515 + $0xb0] sm:$0xff] %v1863
        %1924 = vst [vmem:[%s515 + $0xb8] sm:$0xff] %v1866
        %1925 = vst [vmem:[%s515 + $0xc0] sm:$0xff] %v1871
        %1926 = vst [vmem:[%s515 + $0xc8] sm:$0xff] %v1874
        %1927 = vst [vmem:[%s515 + $0xd0] sm:$0xff] %v1879
        %1928 = vst [vmem:[%s515 + $0xd8] sm:$0xff] %v1882
        %1929 = vst [vmem:[%s515 + $0xe0] sm:$0xff] %v1887
        %1930 = vst [vmem:[%s515 + $0xe8] sm:$0xff] %v1890
        %1931 = vst [vmem:[%s515 + $0xf0] sm:$0xff] %v1895
        %1932 = vst [vmem:[%s515 + $0xf8] sm:$0xff] %v1898
        %v1933 = vmax.f32 %v1775, 0.0
        %v1934 = vmax.f32 %v1778, 0.0
        %v1935 = vmax.f32 %v1783, 0.0
        %v1936 = vmax.f32 %v1786, 0.0
        %v1937 = vmax.f32 %v1791, 0.0
        %v1938 = vmax.f32 %v1794, 0.0
        %v1939 = vmax.f32 %v1799, 0.0
        %v1940 = vmax.f32 %v1802, 0.0
        %v1941 = vmax.f32 %v1807, 0.0
        %v1942 = vmax.f32 %v1810, 0.0
        %v1943 = vmax.f32 %v1815, 0.0
        %v1944 = vmax.f32 %v1818, 0.0
        %v1945 = vmax.f32 %v1823, 0.0
        %v1946 = vmax.f32 %v1826, 0.0
        %v1947 = vmax.f32 %v1831, 0.0
        %v1948 = vmax.f32 %v1834, 0.0
        %v1949 = vmax.f32 %v1839, 0.0
        %v1950 = vmax.f32 %v1842, 0.0
        %v1951 = vmax.f32 %v1847, 0.0
        %v1952 = vmax.f32 %v1850, 0.0
        %v1953 = vmax.f32 %v1855, 0.0
        %v1954 = vmax.f32 %v1858, 0.0
        %v1955 = vmax.f32 %v1863, 0.0
        %v1956 = vmax.f32 %v1866, 0.0
        %v1957 = vmax.f32 %v1871, 0.0
        %v1958 = vmax.f32 %v1874, 0.0
        %v1959 = vmax.f32 %v1879, 0.0
        %v1960 = vmax.f32 %v1882, 0.0
        %v1961 = vmax.f32 %v1887, 0.0
        %v1962 = vmax.f32 %v1890, 0.0
        %v1963 = vmax.f32 %v1895, 0.0
        %v1964 = vmax.f32 %v1898, 0.0
        %v1965 = vpack.c.bf16 %v1934, %v1933
        %v1966 = vpack.c.bf16 %v1936, %v1935
        %v1967 = vpack.c.bf16 %v1938, %v1937
        %v1968 = vpack.c.bf16 %v1940, %v1939
        %v1969 = vpack.c.bf16 %v1942, %v1941
        %v1970 = vpack.c.bf16 %v1944, %v1943
        %v1971 = vpack.c.bf16 %v1946, %v1945
        %v1972 = vpack.c.bf16 %v1948, %v1947
        %v1973 = vpack.c.bf16 %v1950, %v1949
        %v1974 = vpack.c.bf16 %v1952, %v1951
        %v1975 = vpack.c.bf16 %v1954, %v1953
        %v1976 = vpack.c.bf16 %v1956, %v1955
        %v1977 = vpack.c.bf16 %v1958, %v1957
        %v1978 = vpack.c.bf16 %v1960, %v1959
        %v1979 = vpack.c.bf16 %v1962, %v1961
        %v1980 = vpack.c.bf16 %v1964, %v1963
        %v1981 = vld [vmem:[#allocation11] sm:$0xf]
        %v1982 = vld [vmem:[#allocation11 + $0x4] sm:$0xf]
        %v1983 = vld [vmem:[#allocation11 + $0x8] sm:$0xf]
        %v1984 = vld [vmem:[#allocation11 + $0xc] sm:$0xf]
        %v1985 = vld [vmem:[#allocation11 + $0x10] sm:$0xf]
        %v1986 = vld [vmem:[#allocation11 + $0x14] sm:$0xf]
        %v1987 = vld [vmem:[#allocation11 + $0x18] sm:$0xf]
        %v1988 = vld [vmem:[#allocation11 + $0x1c] sm:$0xf]
        %v1989 = vld [vmem:[#allocation11 + $0x20] sm:$0xf]
        %v1990 = vld [vmem:[#allocation11 + $0x24] sm:$0xf]
        %v1991 = vld [vmem:[#allocation11 + $0x28] sm:$0xf]
        %v1992 = vld [vmem:[#allocation11 + $0x2c] sm:$0xf]
        %v1993 = vld [vmem:[#allocation11 + $0x30] sm:$0xf]
        %v1994 = vld [vmem:[#allocation11 + $0x34] sm:$0xf]
        %v1995 = vld [vmem:[#allocation11 + $0x38] sm:$0xf]
        %v1996 = vld [vmem:[#allocation11 + $0x3c] sm:$0xf]
        %v1997 = vld [vmem:[%s10] sm:$0x1]
        %v1999 = vlaneseq
        %v2000 = vshrl.u32 %v1999, 7
        %v2001 = vsub.s32 0, %v2000
        %v2002 = vrot.slane %v1997, %v2001
        %v2020 = vunpack.c.l.b16 %v1981
        %v2021 = vunpack.c.l.b16 %v1982
        %v2022 = vunpack.c.l.b16 %v1983
        %v2023 = vunpack.c.l.b16 %v1984
        %v2024 = vunpack.c.l.b16 %v1985
        %v2025 = vunpack.c.l.b16 %v1986
        %v2026 = vunpack.c.l.b16 %v1987
        %v2027 = vunpack.c.l.b16 %v1988
        %v2028 = vunpack.c.l.b16 %v1989
        %v2029 = vunpack.c.l.b16 %v1990
        %v2030 = vunpack.c.l.b16 %v1991
        %v2031 = vunpack.c.l.b16 %v1992
        %v2032 = vunpack.c.l.b16 %v1993
        %v2033 = vunpack.c.l.b16 %v1994
        %v2034 = vunpack.c.l.b16 %v1995
        %v2035 = vunpack.c.l.b16 %v1996
        %v2036 = vpack.c.b16 %v2021, %v2020
        %v2037 = vpack.c.b16 %v2023, %v2022
        %v2038 = vpack.c.b16 %v2025, %v2024
        %v2039 = vpack.c.b16 %v2027, %v2026
        %v2040 = vpack.c.b16 %v2029, %v2028
        %v2041 = vpack.c.b16 %v2031, %v2030
        %v2042 = vpack.c.b16 %v2033, %v2032
        %v2043 = vpack.c.b16 %v2035, %v2034
        %2052 = vmatprep.subr.bf16.mxu0 0
        %2053 = vmatpush1.bf16.msra.mxu0 %v2036
        %2054 = vmatprep.subr.bf16.mxu0 0
        %2055 = vmatpush1.bf16.msra.mxu0 %v2037
        %2056 = vmatprep.subr.bf16.mxu0 0
        %2057 = vmatpush1.bf16.msra.mxu0 %v2038
        %2058 = vmatprep.subr.bf16.mxu0 0
        %2059 = vmatpush1.bf16.msra.mxu0 %v2039
        %2060 = vmatprep.subr.bf16.mxu0 0
        %2061 = vmatpush1.bf16.msra.mxu0 %v2040
        %2062 = vmatprep.subr.bf16.mxu0 0
        %2063 = vmatpush1.bf16.msra.mxu0 %v2041
        %2064 = vmatprep.subr.bf16.mxu0 0
        %2065 = vmatpush1.bf16.msra.mxu0 %v2042
        %2066 = vmatprep.subr.bf16.mxu0 0
        %2067 = vmatpush1.bf16.msra.mxu0 %v2043
        %2068 = vmatprep.subr.bf16.mxu0 0
        %2069 = vmatpush1.bf16.msra.mxu0 0
        %2070 = vmatprep.subr.bf16.mxu0 0
        %2071 = vmatpush1.bf16.msra.mxu0 0
        %2072 = vmatprep.subr.bf16.mxu0 0
        %2073 = vmatpush1.bf16.msra.mxu0 0
        %2074 = vmatprep.subr.bf16.mxu0 0
        %2075 = vmatpush1.bf16.msra.mxu0 0
        %2076 = vmatprep.subr.bf16.mxu0 0
        %2077 = vmatpush1.bf16.msra.mxu0 0
        %2078 = vmatprep.subr.bf16.mxu0 0
        %2079 = vmatpush1.bf16.msra.mxu0 0
        %2080 = vmatprep.subr.bf16.mxu0 0
        %2081 = vmatpush1.bf16.msra.mxu0 0
        %2082 = vmatprep.subr.bf16.mxu0 0
        %2083 = vmatpush1.bf16.msra.mxu0 0
        %2084 = vmatprep.mubr.bf16.mxu0 0
        %2085 = vmatmul.mubr.bf16.gmra.mrb[0].mxu0 %v1965
        %v2086 = vpop.f32.mrb[0].mxu0
        %v2087 = vadd.f32 %v2002, %v2086
        %v2088 = vpop.f32.mrb[0].mxu0
        %v2089 = vpop.f32.mrb[0].mxu0
        %v2090 = vadd.f32 %v2002, %v2089
        %v2091 = vpop.f32.mrb[0].mxu0
        %2092 = vmatprep.mubr.bf16.mxu0 0
        %2093 = vmatmul.mubr.bf16.gmra.mrb[0].mxu0 %v1966
        %v2094 = vpop.f32.mrb[0].mxu0
        %v2095 = vadd.f32 %v2002, %v2094
        %v2096 = vpop.f32.mrb[0].mxu0
        %v2097 = vpop.f32.mrb[0].mxu0
        %v2098 = vadd.f32 %v2002, %v2097
        %v2099 = vpop.f32.mrb[0].mxu0
        %2100 = vmatprep.mubr.bf16.mxu0 0
        %2101 = vmatmul.mubr.bf16.gmra.mrb[0].mxu0 %v1967
        %v2102 = vpop.f32.mrb[0].mxu0
        %v2103 = vadd.f32 %v2002, %v2102
        %v2104 = vpop.f32.mrb[0].mxu0
        %v2105 = vpop.f32.mrb[0].mxu0
        %v2106 = vadd.f32 %v2002, %v2105
        %v2107 = vpop.f32.mrb[0].mxu0
        %2108 = vmatprep.mubr.bf16.mxu0 0
        %2109 = vmatmul.mubr.bf16.gmra.mrb[0].mxu0 %v1968
        %v2110 = vpop.f32.mrb[0].mxu0
        %v2111 = vadd.f32 %v2002, %v2110
        %v2112 = vpop.f32.mrb[0].mxu0
        %v2113 = vpop.f32.mrb[0].mxu0
        %v2114 = vadd.f32 %v2002, %v2113
        %v2115 = vpop.f32.mrb[0].mxu0
        %2116 = vmatprep.mubr.bf16.mxu0 0
        %2117 = vmatmul.mubr.bf16.gmra.mrb[0].mxu0 %v1969
        %v2118 = vpop.f32.mrb[0].mxu0
        %v2119 = vadd.f32 %v2002, %v2118
        %v2120 = vpop.f32.mrb[0].mxu0
        %v2121 = vpop.f32.mrb[0].mxu0
        %v2122 = vadd.f32 %v2002, %v2121
        %v2123 = vpop.f32.mrb[0].mxu0
        %2124 = vmatprep.mubr.bf16.mxu0 0
        %2125 = vmatmul.mubr.bf16.gmra.mrb[0].mxu0 %v1970
        %v2126 = vpop.f32.mrb[0].mxu0
        %v2127 = vadd.f32 %v2002, %v2126
        %v2128 = vpop.f32.mrb[0].mxu0
        %v2129 = vpop.f32.mrb[0].mxu0
        %v2130 = vadd.f32 %v2002, %v2129
        %v2131 = vpop.f32.mrb[0].mxu0
        %2132 = vmatprep.mubr.bf16.mxu0 0
        %2133 = vmatmul.mubr.bf16.gmra.mrb[0].mxu0 %v1971
        %v2134 = vpop.f32.mrb[0].mxu0
        %v2135 = vadd.f32 %v2002, %v2134
        %v2136 = vpop.f32.mrb[0].mxu0
        %v2137 = vpop.f32.mrb[0].mxu0
        %v2138 = vadd.f32 %v2002, %v2137
        %v2139 = vpop.f32.mrb[0].mxu0
        %2140 = vmatprep.mubr.bf16.mxu0 0
        %2141 = vmatmul.mubr.bf16.gmra.mrb[0].mxu0 %v1972
        %v2142 = vpop.f32.mrb[0].mxu0
        %v2143 = vadd.f32 %v2002, %v2142
        %v2144 = vpop.f32.mrb[0].mxu0
        %v2145 = vpop.f32.mrb[0].mxu0
        %v2146 = vadd.f32 %v2002, %v2145
        %v2147 = vpop.f32.mrb[0].mxu0
        %2148 = vmatprep.mubr.bf16.mxu0 0
        %2149 = vmatmul.mubr.bf16.gmra.mrb[0].mxu0 %v1973
        %v2150 = vpop.f32.mrb[0].mxu0
        %v2151 = vadd.f32 %v2002, %v2150
        %v2152 = vpop.f32.mrb[0].mxu0
        %v2153 = vpop.f32.mrb[0].mxu0
        %v2154 = vadd.f32 %v2002, %v2153
        %v2155 = vpop.f32.mrb[0].mxu0
        %2156 = vmatprep.mubr.bf16.mxu0 0
        %2157 = vmatmul.mubr.bf16.gmra.mrb[0].mxu0 %v1974
        %v2158 = vpop.f32.mrb[0].mxu0
        %v2159 = vadd.f32 %v2002, %v2158
        %v2160 = vpop.f32.mrb[0].mxu0
        %v2161 = vpop.f32.mrb[0].mxu0
        %v2162 = vadd.f32 %v2002, %v2161
        %v2163 = vpop.f32.mrb[0].mxu0
        %2164 = vmatprep.mubr.bf16.mxu0 0
        %2165 = vmatmul.mubr.bf16.gmra.mrb[0].mxu0 %v1975
        %v2166 = vpop.f32.mrb[0].mxu0
        %v2167 = vadd.f32 %v2002, %v2166
        %v2168 = vpop.f32.mrb[0].mxu0
        %v2169 = vpop.f32.mrb[0].mxu0
        %v2170 = vadd.f32 %v2002, %v2169
        %v2171 = vpop.f32.mrb[0].mxu0
        %2172 = vmatprep.mubr.bf16.mxu0 0
        %2173 = vmatmul.mubr.bf16.gmra.mrb[0].mxu0 %v1976
        %v2174 = vpop.f32.mrb[0].mxu0
        %v2175 = vadd.f32 %v2002, %v2174
        %v2176 = vpop.f32.mrb[0].mxu0
        %v2177 = vpop.f32.mrb[0].mxu0
        %v2178 = vadd.f32 %v2002, %v2177
        %v2179 = vpop.f32.mrb[0].mxu0
        %2180 = vmatprep.mubr.bf16.mxu0 0
        %2181 = vmatmul.mubr.bf16.gmra.mrb[0].mxu0 %v1977
        %v2182 = vpop.f32.mrb[0].mxu0
        %v2183 = vadd.f32 %v2002, %v2182
        %v2184 = vpop.f32.mrb[0].mxu0
        %v2185 = vpop.f32.mrb[0].mxu0
        %v2186 = vadd.f32 %v2002, %v2185
        %v2187 = vpop.f32.mrb[0].mxu0
        %2188 = vmatprep.mubr.bf16.mxu0 0
        %2189 = vmatmul.mubr.bf16.gmra.mrb[0].mxu0 %v1978
        %v2190 = vpop.f32.mrb[0].mxu0
        %v2191 = vadd.f32 %v2002, %v2190
        %v2192 = vpop.f32.mrb[0].mxu0
        %v2193 = vpop.f32.mrb[0].mxu0
        %v2194 = vadd.f32 %v2002, %v2193
        %v2195 = vpop.f32.mrb[0].mxu0
        %2196 = vmatprep.mubr.bf16.mxu0 0
        %2197 = vmatmul.mubr.bf16.gmra.mrb[0].mxu0 %v1979
        %v2198 = vpop.f32.mrb[0].mxu0
        %v2199 = vadd.f32 %v2002, %v2198
        %v2200 = vpop.f32.mrb[0].mxu0
        %v2201 = vpop.f32.mrb[0].mxu0
        %v2202 = vadd.f32 %v2002, %v2201
        %v2203 = vpop.f32.mrb[0].mxu0
        %2204 = vmatprep.mubr.bf16.mxu0 0
        %2205 = vmatmul.mubr.bf16.gmra.mrb[0].mxu0 %v1980
        %v2206 = vpop.f32.mrb[0].mxu0
        %v2207 = vadd.f32 %v2002, %v2206
        %v2208 = vpop.f32.mrb[0].mxu0
        %v2209 = vpop.f32.mrb[0].mxu0
        %v2210 = vadd.f32 %v2002, %v2209
        %v2211 = vpop.f32.mrb[0].mxu0
        %2212 = vdwg.mxu0
        %2213 = vst [vmem:[%s508] sm:$0xff] %v2087
        %2214 = vst [vmem:[%s508 + $0x8] sm:$0xff] %v2090
        %2215 = vst [vmem:[%s508 + $0x10] sm:$0xff] %v2095
        %2216 = vst [vmem:[%s508 + $0x18] sm:$0xff] %v2098
        %2217 = vst [vmem:[%s508 + $0x20] sm:$0xff] %v2103
        %2218 = vst [vmem:[%s508 + $0x28] sm:$0xff] %v2106
        %2219 = vst [vmem:[%s508 + $0x30] sm:$0xff] %v2111
        %2220 = vst [vmem:[%s508 + $0x38] sm:$0xff] %v2114
        %2221 = vst [vmem:[%s508 + $0x40] sm:$0xff] %v2119
        %2222 = vst [vmem:[%s508 + $0x48] sm:$0xff] %v2122
        %2223 = vst [vmem:[%s508 + $0x50] sm:$0xff] %v2127
        %2224 = vst [vmem:[%s508 + $0x58] sm:$0xff] %v2130
        %2225 = vst [vmem:[%s508 + $0x60] sm:$0xff] %v2135
        %2226 = vst [vmem:[%s508 + $0x68] sm:$0xff] %v2138
        %2227 = vst [vmem:[%s508 + $0x70] sm:$0xff] %v2143
        %2228 = vst [vmem:[%s508 + $0x78] sm:$0xff] %v2146
        %2229 = vst [vmem:[%s508 + $0x80] sm:$0xff] %v2151
        %2230 = vst [vmem:[%s508 + $0x88] sm:$0xff] %v2154
        %2231 = vst [vmem:[%s508 + $0x90] sm:$0xff] %v2159
        %2232 = vst [vmem:[%s508 + $0x98] sm:$0xff] %v2162
        %2233 = vst [vmem:[%s508 + $0xa0] sm:$0xff] %v2167
        %2234 = vst [vmem:[%s508 + $0xa8] sm:$0xff] %v2170
        %2235 = vst [vmem:[%s508 + $0xb0] sm:$0xff] %v2175
        %2236 = vst [vmem:[%s508 + $0xb8] sm:$0xff] %v2178
        %2237 = vst [vmem:[%s508 + $0xc0] sm:$0xff] %v2183
        %2238 = vst [vmem:[%s508 + $0xc8] sm:$0xff] %v2186
        %2239 = vst [vmem:[%s508 + $0xd0] sm:$0xff] %v2191
        %2240 = vst [vmem:[%s508 + $0xd8] sm:$0xff] %v2194
        %2241 = vst [vmem:[%s508 + $0xe0] sm:$0xff] %v2199
        %2242 = vst [vmem:[%s508 + $0xe8] sm:$0xff] %v2202
        %2243 = vst [vmem:[%s508 + $0xf0] sm:$0xff] %v2207
        %2244 = vst [vmem:[%s508 + $0xf8] sm:$0xff] %v2210
        %s2245 = sand.u32 %s280, 1
        %s2246 = scalar_lea.sflag [#allocation4], %s2245
        %s2247 = sand.u32 %s280, 1
        %s2248 = smul.addr %s2247, 256
        %s2249 = scalar_lea.vmem [#allocation13], %s2248
        %s2250 = sand.u32 %s306, 1
        %s2251 = scalar_lea.sflag [#allocation15], %s2250
        %s2252 = sand.u32 %s306, 1
        %s2253 = smul.addr %s2252, 256
        %s2254 = scalar_lea.vmem [#allocation14], %s2253
        // Predicated region
        $region89: #{tpu_custom_call.1} parent=63 // pred_check
          %p2255 = pneg %p290
        $region90: #{tpu_custom_call.1} parent=63 // pred_check_branch
          %2257 = sbr.rel (%p2255) target = $region92
        $region91: #{tpu_custom_call.1} parent=63 // pred_region
          %s2258 = smul.u32 32, %s36
          %s2260 = ssub.s32 4096, 4096
          %2261 = vsyncadd %s2246, %s2260
          %s2262 = smul.addr %s2258, 128
          %s2263 = scalar_lea.hbm %s11, %s2262
          %s2264 = sshll.u32 %s2249, 4
          %s2265 = int_to_ptr.vmem [resolvable:$true] %s2264
          %2270 = dma.vmem_to_hbm [thread:$0]  %s2265, 4096, %s2263, %s2246, 128, 128, 8
        $region92: #{tpu_custom_call.1} parent=63 // pred_fallthru
          _
        // Predicated region
        $region93: #{tpu_custom_call.1} parent=63 // pred_check
          %p2271 = pneg %p316
        $region94: #{tpu_custom_call.1} parent=63 // pred_check_branch
          %2273 = sbr.rel (%p2271) target = $region96
        $region95: #{tpu_custom_call.1} parent=63 // pred_region
          %s2274 = smul.u32 32, %s36
          %s2276 = ssub.s32 4096, 4096
          %2277 = vsyncadd %s2251, %s2276
          %s2278 = smul.addr %s2274, 128
          %s2279 = scalar_lea.hbm %s12, %s2278
          %s2280 = sshll.u32 %s2254, 4
          %s2281 = int_to_ptr.vmem [resolvable:$true] %s2280
          %2286 = dma.vmem_to_hbm [thread:$0]  %s2281, 4096, %s2279, %s2251, 128, 128, 8
        $region96: #{tpu_custom_call.1} parent=63 // pred_fallthru
          _
      $region64: #{tpu_custom_call.1} parent=5 // pred_fallthru
        _
      %p2287 = scmp.le.s32.totalorder 2, %s31
      // Predicated region
      $region97: #{tpu_custom_call.1} parent=5 // pred_check
        %p2288 = pneg %p2287
      $region98: #{tpu_custom_call.1} parent=5 // pred_check_branch
        %2290 = sbr.rel (%p2288) target = $region100
      $region99: #{tpu_custom_call.1} parent=5 // pred_region
        %s2291 = ssub.s32 %s31, 2
        // Predicated region
        $region101: #{tpu_custom_call.1} parent=99 // pred_check
          %p2292 = pneg %p296
        $region102: #{tpu_custom_call.1} parent=99 // pred_check_branch
          %2294 = sbr.rel (%p2292) target = $region104
        $region103: #{tpu_custom_call.1} parent=99 // pred_region
          %s2295 = sand.u32 %s281, 1
          %s2296 = scalar_lea.sflag [#allocation4], %s2295
          %s2297 = sand.u32 %s281, 1
          %s2298 = smul.addr %s2297, 256
          %s2299 = scalar_lea.vmem [#allocation13], %s2298
          %2300 = dma.done %s2296, 4096
        $region104: #{tpu_custom_call.1} parent=99 // pred_fallthru
          _
        // Predicated region
        $region105: #{tpu_custom_call.1} parent=99 // pred_check
          %p2301 = pneg %p322
        $region106: #{tpu_custom_call.1} parent=99 // pred_check_branch
          %2303 = sbr.rel (%p2301) target = $region108
        $region107: #{tpu_custom_call.1} parent=99 // pred_region
          %s2304 = sand.u32 %s307, 1
          %s2305 = scalar_lea.sflag [#allocation15], %s2304
          %s2306 = sand.u32 %s307, 1
          %s2307 = smul.addr %s2306, 256
          %s2308 = scalar_lea.vmem [#allocation14], %s2307
          %2309 = dma.done %s2305, 4096
        $region108: #{tpu_custom_call.1} parent=99 // pred_fallthru
          _
      $region100: #{tpu_custom_call.1} parent=5 // pred_fallthru
        _
    $region6: #{tpu_custom_call.1} parent=1 // loop_footer
      %s35 = sadd.s32 1, %s31
    $region7: #{tpu_custom_call.1} parent=1 // loop_footer_branch
      %30 = sbr.rel target = $region3
    $region8: #{tpu_custom_call.1} parent=1 // loop_exit
      _
    %2310 = vsyncpa [#allocation3], 1
    %s2311 = scalar_lea.sflag [#allocation3], 1
    %2312 = vsyncpa %s2311, 1
    %2313 = vsyncpa [#allocation6], 1
    %2314 = vsyncpa [#allocation9], 1
    %2315 = vsyncpa [#allocation12], 1
    %2316 = vsyncpa [#allocation4], 1
    %s2317 = scalar_lea.sflag [#allocation4], 1
    %2318 = vsyncpa %s2317, 1
    %2319 = vsyncpa [#allocation15], 1
    %s2320 = scalar_lea.sflag [#allocation15], 1
    %2321 = vsyncpa %s2320, 1

</llo_original>
